<compile_context>
chip_gen: v6e
topology: v6e:2x2x1
jax: 0.10.0
libtpu: 0.0.40
codegen_flags: <defaults>
</compile_context>

<pallas_src>
import functools

import jax
import jax.numpy as jnp
from jax import lax
from jax.experimental import pallas as pl
from jax.experimental.pallas import tpu as pltpu

D_MODEL = 384
NUM_HEADS = 6
HEAD_DIM_V = 64 // 4            # 16
D_V = D_MODEL // 4              # 96
D_QK = NUM_HEADS               # 6
FUSED = 128                     # fused projection width [V | Q | K | pad]
COL_V = 0
COL_Q = D_V                     # 96
COL_K = D_V + D_QK              # 102
PAD_COLS = FUSED - (D_V + 2 * D_QK)   # 20

HB_ROWS = HEAD_DIM_V + 2        # per-head staged block rows: [v_h^T (16) | ones (1) | k_h^T (1)]
ROW_ONES = HEAD_DIM_V           # 16
ROW_K = HEAD_DIM_V + 1          # 17


def _round_up(v, m):
    return ((v + m - 1) // m) * m


def _vmem_cap_bytes():
    """~0.82x of this chip's physical VMEM (v7x: 64 MiB/TC, v5e/v6e: 128 MiB)."""
    try:
        cap = int(pltpu.get_tpu_info().vmem_capacity_bytes)
    except Exception:
        cap = 64 * 1024 * 1024     # conservative (v7x) fallback
    return int(cap * 0.82)


def _vmem_bytes_estimate(T, T_pad, tq):
    """Per-grid-step VMEM working set: pipeline buffers + persistent scratch + temps."""
    lt = _round_up(max(T, 1), 128)                       # lane-padded T
    blocks = 2 * (T * D_MODEL + D_MODEL * FUSED + FUSED + tq * FUSED)   # double-buffered
    scratch = (T_pad * FUSED                              # kvp
               + NUM_HEADS * HB_ROWS * lt                 # head blocks
               + 8 * 128                                  # kstat (padded)
               + 2 * NUM_HEADS * tq * 128)                # qm + oh (lane padded)
    temps = (T * FUSED                                    # hoist-time projection result
             + 3 * tq * lt                                # s / p (with slack)
             + lt * 128                                   # per-head transposed v block
             + 4 * tq * FUSED)                            # small per-tile temporaries
    return (blocks + scratch + temps) * 4


def _attention1_kernel(x_ref, w_ref, b_ref, o_ref,
                       kvp_ref, hb_ref, kstat_ref, qm_ref, oh_ref,
                       *, T, T_pad, tq):
    i = pl.program_id(1)

    # ---------- per-batch hoist: ONE fused projection + head-major staging ----------
    @pl.when(i == 0)
    def _stage_batch():
        x = x_ref[0]                                                           # (T, 384)
        qkv = jnp.dot(x, w_ref[...],
                      preferred_element_type=jnp.float32) + b_ref[...]         # (T, 128)
        kvp_ref[0:T, :] = qkv
        if T_pad > T:                                                          # zero tail query rows
            kvp_ref[T:T_pad, :] = jnp.zeros((T_pad - T, FUSED), jnp.float32)

        k = qkv[:, COL_K:COL_K + D_QK]                                         # (T, 6)
        v = qkv[:, COL_V:COL_V + D_V]                                          # (T, 96)
        # exact per-head key extrema (rank-1 row-max of the scores)
        kstat_ref[0:1, :] = jnp.max(k, axis=0, keepdims=True)
        kstat_ref[1:2, :] = jnp.min(k, axis=0, keepdims=True)

        vT = jnp.transpose(v)                                                  # (96, T)
        kT = jnp.transpose(k)                                                  # (6, T)
        ones_row = jnp.ones((1, T), jnp.float32)
        for h in range(NUM_HEADS):                                             # static; once per batch
            hb_ref[h, 0:HEAD_DIM_V, :] = vT[h * HEAD_DIM_V:(h + 1) * HEAD_DIM_V, :]
            hb_ref[h, ROW_ONES:ROW_ONES + 1, :] = ones_row                     # fused rowsum column
            hb_ref[h, ROW_K:ROW_K + 1, :] = kT[h:h + 1, :]

    # ---------- per-tile: q rows + exact row-max, staged per head ----------
    row0 = pl.multiple_of(i * tq, tq)
    q = kvp_ref[pl.ds(row0, tq), :][:, COL_Q:COL_Q + D_QK]                     # (tq, 6)
    kmax = kstat_ref[0:1, :]
    kmin = kstat_ref[1:2, :]
    m = jnp.maximum(q * kmax, q * kmin)                                        # exact per-row score max
    for h in range(NUM_HEADS):                                                 # static; tiny (tq,1) stores
        qm_ref[h, :, 0:1] = q[:, h:h + 1]
        qm_ref[h, :, 1:2] = m[:, h:h + 1]

    # ---------- rolled head loop: bounds the (tq,T) temporaries to one head ----------
    def _head(h, carry):
        blk = hb_ref[h]                                                        # (18, T)
        vt = jnp.transpose(blk[0:HEAD_DIM_V + 1, :])                           # (T, 17) = [v_h | 1]
        k_row = blk[ROW_K:ROW_K + 1, :]                                        # (1, T)
        qm = qm_ref[h]                                                         # (tq, 2)
        s = qm[:, 0:1] * k_row - qm[:, 1:2]                                    # (tq, T) stabilized scores
        p = jnp.exp(s)                                                         # unnormalized probs (EUP)
        res = jnp.dot(p, vt, preferred_element_type=jnp.float32)               # (tq, 17): acc | rowsum
        oh_ref[h] = res[:, 0:HEAD_DIM_V] * pl.reciprocal(
            res[:, HEAD_DIM_V:HEAD_DIM_V + 1], approx=False)                   # deferred normalization
        return carry

    lax.fori_loop(0, NUM_HEADS, _head, 0)

    # ---------- assemble one lane-dense (tq, 128) slab and store it once ----------
    parts = [oh_ref[h] for h in range(NUM_HEADS)]
    parts.append(jnp.zeros((tq, FUSED - D_V), jnp.float32))
    o_ref[0] = jnp.concatenate(parts, axis=-1)


def attention1_forward(x, wq, bq, wk, bk, wv, bv, *, q_tile=128):
    B, T, D = x.shape
    assert D == D_MODEL
    f32 = jnp.float32

    # Fused, zero-padded projection weight/bias: columns [0:96)=V, [96:102)=Q, [102:108)=K.
    w_f = jnp.concatenate(
        [wv.astype(f32), wq.astype(f32), wk.astype(f32),
         jnp.zeros((D_MODEL, PAD_COLS), f32)], axis=1)                         # (384, 128)
    b_f = jnp.concatenate(
        [bv.reshape(1, D_V).astype(f32), bq.reshape(1, D_QK).astype(f32),
         bk.reshape(1, D_QK).astype(f32), jnp.zeros((1, PAD_COLS), f32)], axis=1)  # (1, 128)

    # Query-tile size: multiple of 8, shrunk until the working set fits this chip's VMEM.
    cap = _vmem_cap_bytes()
    tq = max(8, min(_round_up(q_tile, 8), _round_up(T, 8)))
    while tq > 8 and _vmem_bytes_estimate(T, pl.cdiv(T, tq) * tq, tq) > cap:
        tq = max(8, _round_up(tq // 2, 8))
    n_tiles = pl.cdiv(T, tq)
    T_pad = n_tiles * tq

    vmem_limit = int(min(max(_vmem_bytes_estimate(T, T_pad, tq), 32 * 1024 * 1024), cap))

    kernel = functools.partial(_attention1_kernel, T=T, T_pad=T_pad, tq=tq)

    out = pl.pallas_call(
        kernel,
        out_shape=jax.ShapeDtypeStruct((B, T_pad, FUSED), f32),
        grid=(B, n_tiles),
        in_specs=[
            pl.BlockSpec((1, T, D_MODEL), lambda b, i: (b, 0, 0)),   # x (full sequence; re-read per batch only)
            pl.BlockSpec((D_MODEL, FUSED), lambda b, i: (0, 0)),     # fused W
            pl.BlockSpec((1, FUSED), lambda b, i: (0, 0)),           # fused bias
        ],
        out_specs=pl.BlockSpec((1, tq, FUSED), lambda b, i: (b, i, 0)),
        scratch_shapes=[
            pltpu.VMEM((T_pad, FUSED), f32),                         # kvp: fused projection (per batch)
            pltpu.VMEM((NUM_HEADS, HB_ROWS, T), f32),                # per-head [v^T | 1 | k^T] blocks
            pltpu.VMEM((2, D_QK), f32),                              # kmax / kmin
            pltpu.VMEM((NUM_HEADS, tq, 2), f32),                     # per-head (q, m) columns for this tile
            pltpu.VMEM((NUM_HEADS, tq, HEAD_DIM_V), f32),            # per-head outputs for this tile
        ],
        compiler_params=pltpu.CompilerParams(
            dimension_semantics=("parallel", "arbitrary"),
            vmem_limit_bytes=vmem_limit),
    )(x.astype(f32), w_f, b_f)

    return out[:, :T, :D_V]


def attention1_reference(x, wq, bq, wk, bk, wv, bv):
    """Pure-JAX reference mirroring the PyTorch forward."""
    B, T, _ = x.shape
    q = x @ wq + bq.reshape(1, D_QK)
    k = x @ wk + bk.reshape(1, D_QK)
    v = x @ wv + bv.reshape(1, D_V)
    q_ = jnp.transpose(q.reshape(B, T, NUM_HEADS, 1), (0, 2, 1, 3))
    k_ = jnp.transpose(k.reshape(B, T, NUM_HEADS, 1), (0, 2, 1, 3))
    v_ = jnp.transpose(v.reshape(B, T, NUM_HEADS, HEAD_DIM_V), (0, 2, 1, 3))
    s = jnp.einsum("bhid,bhjd->bhij", q_, k_)            # scale = 1/sqrt(1)
    p = jax.nn.softmax(s, axis=-1)
    o = jnp.einsum("bhij,bhjd->bhid", p, v_)
    return jnp.transpose(o, (0, 2, 1, 3)).reshape(B, T, D_V)


if __name__ == "__main__":
    key = jax.random.PRNGKey(0)
    ks = jax.random.split(key, 10)

    B, T = 2, 8
    x = jax.random.normal(ks[0], (B, T, D_MODEL), dtype=jnp.float32)
    y = jax.random.normal(ks[1], (B, T, D_MODEL), dtype=jnp.float32)   # unused by forward
    z = jax.random.normal(ks[2], (B, T, D_MODEL), dtype=jnp.float32)   # unused by forward

    # PyTorch nn.Linear-style uniform(-1/sqrt(in), 1/sqrt(in)) params
    bound = 1.0 / (D_MODEL ** 0.5)
    wq = jax.random.uniform(ks[3], (D_MODEL, D_QK), jnp.float32, -bound, bound)
    bq = jax.random.uniform(ks[4], (1, D_QK), jnp.float32, -bound, bound)
    wk = jax.random.uniform(ks[5], (D_MODEL, D_QK), jnp.float32, -bound, bound)
    bk = jax.random.uniform(ks[6], (1, D_QK), jnp.float32, -bound, bound)
    wv = jax.random.uniform(ks[7], (D_MODEL, D_V), jnp.float32, -bound, bound)
    bv = jax.random.uniform(ks[8], (1, D_V), jnp.float32, -bound, bound)

    # Primary small-shape path (single query tile per batch, grid (2, 1)).
    out = jax.block_until_ready(attention1_forward(x, wq, bq, wk, bk, wv, bv))
    ref = attention1_reference(x, wq, bq, wk, bk, wv, bv)
    assert out.shape == (B, T, D_V), out.shape
    assert jnp.allclose(out, ref, atol=1e-4, rtol=1e-4), float(jnp.max(jnp.abs(out - ref)))

    # Multi-tile path (T=16, tile 8 -> grid (2, 2)) exercising the hoist + rolled head loop.
    T2 = 16
    x2 = jax.random.normal(ks[9], (B, T2, D_MODEL), dtype=jnp.float32)
    out2 = jax.block_until_ready(attention1_forward(x2, wq, bq, wk, bk, wv, bv, q_tile=8))
    ref2 = attention1_reference(x2, wq, bq, wk, bk, wv, bv)
    assert out2.shape == (B, T2, D_V), out2.shape
    assert jnp.allclose(out2, ref2, atol=1e-4, rtol=1e-4), float(jnp.max(jnp.abs(out2 - ref2)))

    # Ragged tail (T=12, tile 8 -> padded tail tile, wrapper slices back to T).
    T3 = 12
    x3 = x2[:, :T3, :]
    out3 = jax.block_until_ready(attention1_forward(x3, wq, bq, wk, bk, wv, bv, q_tile=8))
    ref3 = attention1_reference(x3, wq, bq, wk, bk, wv, bv)
    assert out3.shape == (B, T3, D_V), out3.shape
    assert jnp.allclose(out3, ref3, atol=1e-4, rtol=1e-4), float(jnp.max(jnp.abs(out3 - ref3)))

    print("KERNEL_OK")
</pallas_src>

<mosaic_0001>
module attributes {stable_mosaic.version = 11 : i64} {
  func.func @_attention1_kernel(%arg0: i32, %arg1: i32, %arg2: memref<1x8x384xf32, #tpu.memory_space<vmem>>, %arg3: memref<384x128xf32, #tpu.memory_space<vmem>>, %arg4: memref<1x128xf32, #tpu.memory_space<vmem>>, %arg5: memref<1x8x128xf32, #tpu.memory_space<vmem>>, %arg6: memref<8x128xf32, #tpu.memory_space<vmem>>, %arg7: memref<6x18x8xf32, #tpu.memory_space<vmem>>, %arg8: memref<2x6xf32, #tpu.memory_space<vmem>>, %arg9: memref<6x8x2xf32, #tpu.memory_space<vmem>>, %arg10: memref<6x8x16xf32, #tpu.memory_space<vmem>>) attributes {dimension_semantics = [#tpu.dimension_semantics<parallel>, #tpu.dimension_semantics<arbitrary>], iteration_bounds = array<i64: 2, 1>, scalar_prefetch = 0 : i64, scratch_operands = 5 : i64, tpu.core_type = #tpu.core_type<tc>, window_params = [{transform_indices = @transform_0, window_bounds = array<i64: 1, 8, 384>}, {pipeline_mode = #tpu.pipeline_mode<synchronous>, transform_indices = @transform_1, window_bounds = array<i64: 384, 128>}, {pipeline_mode = #tpu.pipeline_mode<synchronous>, transform_indices = @transform_2, window_bounds = array<i64: 1, 128>}, {transform_indices = @transform_3, window_bounds = array<i64: 1, 8, 128>}]} {
    %c0_i32 = arith.constant 0 : i32
    %0 = arith.cmpi eq, %arg1, %c0_i32 : i32
    %1 = arith.extui %0 : i1 to i32
    %c0_i32_0 = arith.constant 0 : i32
    %2 = arith.cmpi ne, %1, %c0_i32_0 : i32
    scf.if %2 {
      %c0_59 = arith.constant 0 : index
      %c0_60 = arith.constant 0 : index
      %c0_61 = arith.constant 0 : index
      %81 = vector.load %arg2[%c0_59, %c0_60, %c0_61] : memref<1x8x384xf32, #tpu.memory_space<vmem>>, vector<1x8x384xf32>
      %82 = vector.shape_cast %81 : vector<1x8x384xf32> to vector<8x384xf32>
      %c0_62 = arith.constant 0 : index
      %c0_63 = arith.constant 0 : index
      %83 = vector.load %arg3[%c0_62, %c0_63] : memref<384x128xf32, #tpu.memory_space<vmem>>, vector<384x128xf32>
      %cst_64 = arith.constant dense<0.000000e+00> : vector<8x128xf32>
      %84 = tpu.matmul %82, %83, %cst_64 {dimension_numbers = #tpu.dot_dimension_numbers<[1], [0], [0], [1], [0, 0, 1, 1], [], []>} : vector<8x384xf32>, vector<384x128xf32>, vector<8x128xf32> -> vector<8x128xf32>
      %c0_65 = arith.constant 0 : index
      %c0_66 = arith.constant 0 : index
      %85 = vector.load %arg4[%c0_65, %c0_66] : memref<1x128xf32, #tpu.memory_space<vmem>>, vector<1x128xf32>
      %86 = vector.broadcast %85 : vector<1x128xf32> to vector<8x128xf32>
      %87 = arith.addf %84, %86 : vector<8x128xf32>
      %c0_67 = arith.constant 0 : index
      %c0_68 = arith.constant 0 : index
      %88 = vector.load %arg6[%c0_67, %c0_68] : memref<8x128xf32, #tpu.memory_space<vmem>>, vector<8x128xf32>
      tpu.vector_store %arg6[%c0_67, %c0_68], %87 {strides = array<i32>} : memref<8x128xf32, #tpu.memory_space<vmem>>, vector<8x128xf32>,
      %89 = vector.extract_strided_slice %87 {offsets = [0, 102], sizes = [8, 6], strides = [1, 1]} : vector<8x128xf32> to vector<8x6xf32>
      %90 = vector.extract_strided_slice %87 {offsets = [0, 0], sizes = [8, 96], strides = [1, 1]} : vector<8x128xf32> to vector<8x96xf32>
      %cst_69 = arith.constant dense<0xFF800000> : vector<6xf32>
      %91 = vector.multi_reduction <maximumf>, %89, %cst_69 [0] : vector<8x6xf32> to vector<6xf32>
      %92 = vector.shape_cast %91 : vector<6xf32> to vector<1x6xf32>
      %c0_70 = arith.constant 0 : index
      %c0_71 = arith.constant 0 : index
      %93 = vector.load %arg8[%c0_70, %c0_71] : memref<2x6xf32, #tpu.memory_space<vmem>>, vector<1x6xf32>
      tpu.vector_store %arg8[%c0_70, %c0_71], %92 {strides = array<i32>} : memref<2x6xf32, #tpu.memory_space<vmem>>, vector<1x6xf32>,
      %cst_72 = arith.constant dense<0x7F800000> : vector<6xf32>
      %94 = vector.multi_reduction <minimumf>, %89, %cst_72 [0] : vector<8x6xf32> to vector<6xf32>
      %95 = vector.shape_cast %94 : vector<6xf32> to vector<1x6xf32>
      %c1_73 = arith.constant 1 : index
      %c0_74 = arith.constant 0 : index
      %96 = vector.load %arg8[%c1_73, %c0_74] : memref<2x6xf32, #tpu.memory_space<vmem>>, vector<1x6xf32>
      tpu.vector_store %arg8[%c1_73, %c0_74], %95 {strides = array<i32>} : memref<2x6xf32, #tpu.memory_space<vmem>>, vector<1x6xf32>,
      %97 = tpu.transpose %90, [1, 0] : vector<8x96xf32> -> vector<96x8xf32>
      %98 = tpu.transpose %89, [1, 0] : vector<8x6xf32> -> vector<6x8xf32>
      %cst_75 = arith.constant 1.000000e+00 : f32
      %99 = vector.broadcast %cst_75 : f32 to vector<1x8xf32>
      %100 = vector.extract_strided_slice %97 {offsets = [0, 0], sizes = [16, 8], strides = [1, 1]} : vector<96x8xf32> to vector<16x8xf32>
      %c0_76 = arith.constant 0 : index
      %c0_77 = arith.constant 0 : index
      %c0_78 = arith.constant 0 : index
      %101 = vector.load %arg7[%c0_76, %c0_77, %c0_78] : memref<6x18x8xf32, #tpu.memory_space<vmem>>, vector<1x16x8xf32>
      %102 = vector.shape_cast %101 : vector<1x16x8xf32> to vector<16x8xf32>
      %103 = vector.shape_cast %100 : vector<16x8xf32> to vector<1x16x8xf32>
      tpu.vector_store %arg7[%c0_76, %c0_77, %c0_78], %103 {strides = array<i32>} : memref<6x18x8xf32, #tpu.memory_space<vmem>>, vector<1x16x8xf32>,
      %c0_79 = arith.constant 0 : index
      %c16 = arith.constant 16 : index
      %c0_80 = arith.constant 0 : index
      %104 = vector.load %arg7[%c0_79, %c16, %c0_80] : memref<6x18x8xf32, #tpu.memory_space<vmem>>, vector<1x1x8xf32>
      %105 = vector.shape_cast %104 : vector<1x1x8xf32> to vector<1x8xf32>
      %106 = vector.shape_cast %99 : vector<1x8xf32> to vector<1x1x8xf32>
      tpu.vector_store %arg7[%c0_79, %c16, %c0_80], %106 {strides = array<i32>} : memref<6x18x8xf32, #tpu.memory_space<vmem>>, vector<1x1x8xf32>,
      %107 = vector.extract_strided_slice %98 {offsets = [0, 0], sizes = [1, 8], strides = [1, 1]} : vector<6x8xf32> to vector<1x8xf32>
      %c0_81 = arith.constant 0 : index
      %c17 = arith.constant 17 : index
      %c0_82 = arith.constant 0 : index
      %108 = vector.load %arg7[%c0_81, %c17, %c0_82] : memref<6x18x8xf32, #tpu.memory_space<vmem>>, vector<1x1x8xf32>
      %109 = vector.shape_cast %108 : vector<1x1x8xf32> to vector<1x8xf32>
      %110 = vector.shape_cast %107 : vector<1x8xf32> to vector<1x1x8xf32>
      tpu.vector_store %arg7[%c0_81, %c17, %c0_82], %110 {strides = array<i32>} : memref<6x18x8xf32, #tpu.memory_space<vmem>>, vector<1x1x8xf32>,
      %111 = vector.extract_strided_slice %97 {offsets = [16, 0], sizes = [16, 8], strides = [1, 1]} : vector<96x8xf32> to vector<16x8xf32>
      %c1_83 = arith.constant 1 : index
      %c0_84 = arith.constant 0 : index
      %c0_85 = arith.constant 0 : index
      %112 = vector.load %arg7[%c1_83, %c0_84, %c0_85] : memref<6x18x8xf32, #tpu.memory_space<vmem>>, vector<1x16x8xf32>
      %113 = vector.shape_cast %112 : vector<1x16x8xf32> to vector<16x8xf32>
      %114 = vector.shape_cast %111 : vector<16x8xf32> to vector<1x16x8xf32>
      tpu.vector_store %arg7[%c1_83, %c0_84, %c0_85], %114 {strides = array<i32>} : memref<6x18x8xf32, #tpu.memory_space<vmem>>, vector<1x16x8xf32>,
      %c1_86 = arith.constant 1 : index
      %c16_87 = arith.constant 16 : index
      %c0_88 = arith.constant 0 : index
      %115 = vector.load %arg7[%c1_86, %c16_87, %c0_88] : memref<6x18x8xf32, #tpu.memory_space<vmem>>, vector<1x1x8xf32>
      %116 = vector.shape_cast %115 : vector<1x1x8xf32> to vector<1x8xf32>
      %117 = vector.shape_cast %99 : vector<1x8xf32> to vector<1x1x8xf32>
      tpu.vector_store %arg7[%c1_86, %c16_87, %c0_88], %117 {strides = array<i32>} : memref<6x18x8xf32, #tpu.memory_space<vmem>>, vector<1x1x8xf32>,
      %118 = vector.extract_strided_slice %98 {offsets = [1, 0], sizes = [1, 8], strides = [1, 1]} : vector<6x8xf32> to vector<1x8xf32>
      %c1_89 = arith.constant 1 : index
      %c17_90 = arith.constant 17 : index
      %c0_91 = arith.constant 0 : index
      %119 = vector.load %arg7[%c1_89, %c17_90, %c0_91] : memref<6x18x8xf32, #tpu.memory_space<vmem>>, vector<1x1x8xf32>
      %120 = vector.shape_cast %119 : vector<1x1x8xf32> to vector<1x8xf32>
      %121 = vector.shape_cast %118 : vector<1x8xf32> to vector<1x1x8xf32>
      tpu.vector_store %arg7[%c1_89, %c17_90, %c0_91], %121 {strides = array<i32>} : memref<6x18x8xf32, #tpu.memory_space<vmem>>, vector<1x1x8xf32>,
      %122 = vector.extract_strided_slice %97 {offsets = [32, 0], sizes = [16, 8], strides = [1, 1]} : vector<96x8xf32> to vector<16x8xf32>
      %c2_92 = arith.constant 2 : index
      %c0_93 = arith.constant 0 : index
      %c0_94 = arith.constant 0 : index
      %123 = vector.load %arg7[%c2_92, %c0_93, %c0_94] : memref<6x18x8xf32, #tpu.memory_space<vmem>>, vector<1x16x8xf32>
      %124 = vector.shape_cast %123 : vector<1x16x8xf32> to vector<16x8xf32>
      %125 = vector.shape_cast %122 : vector<16x8xf32> to vector<1x16x8xf32>
      tpu.vector_store %arg7[%c2_92, %c0_93, %c0_94], %125 {strides = array<i32>} : memref<6x18x8xf32, #tpu.memory_space<vmem>>, vector<1x16x8xf32>,
      %c2_95 = arith.constant 2 : index
      %c16_96 = arith.constant 16 : index
      %c0_97 = arith.constant 0 : index
      %126 = vector.load %arg7[%c2_95, %c16_96, %c0_97] : memref<6x18x8xf32, #tpu.memory_space<vmem>>, vector<1x1x8xf32>
      %127 = vector.shape_cast %126 : vector<1x1x8xf32> to vector<1x8xf32>
      %128 = vector.shape_cast %99 : vector<1x8xf32> to vector<1x1x8xf32>
      tpu.vector_store %arg7[%c2_95, %c16_96, %c0_97], %128 {strides = array<i32>} : memref<6x18x8xf32, #tpu.memory_space<vmem>>, vector<1x1x8xf32>,
      %129 = vector.extract_strided_slice %98 {offsets = [2, 0], sizes = [1, 8], strides = [1, 1]} : vector<6x8xf32> to vector<1x8xf32>
      %c2_98 = arith.constant 2 : index
      %c17_99 = arith.constant 17 : index
      %c0_100 = arith.constant 0 : index
      %130 = vector.load %arg7[%c2_98, %c17_99, %c0_100] : memref<6x18x8xf32, #tpu.memory_space<vmem>>, vector<1x1x8xf32>
      %131 = vector.shape_cast %130 : vector<1x1x8xf32> to vector<1x8xf32>
      %132 = vector.shape_cast %129 : vector<1x8xf32> to vector<1x1x8xf32>
      tpu.vector_store %arg7[%c2_98, %c17_99, %c0_100], %132 {strides = array<i32>} : memref<6x18x8xf32, #tpu.memory_space<vmem>>, vector<1x1x8xf32>,
      %133 = vector.extract_strided_slice %97 {offsets = [48, 0], sizes = [16, 8], strides = [1, 1]} : vector<96x8xf32> to vector<16x8xf32>
      %c3_101 = arith.constant 3 : index
      %c0_102 = arith.constant 0 : index
      %c0_103 = arith.constant 0 : index
      %134 = vector.load %arg7[%c3_101, %c0_102, %c0_103] : memref<6x18x8xf32, #tpu.memory_space<vmem>>, vector<1x16x8xf32>
      %135 = vector.shape_cast %134 : vector<1x16x8xf32> to vector<16x8xf32>
      %136 = vector.shape_cast %133 : vector<16x8xf32> to vector<1x16x8xf32>
      tpu.vector_store %arg7[%c3_101, %c0_102, %c0_103], %136 {strides = array<i32>} : memref<6x18x8xf32, #tpu.memory_space<vmem>>, vector<1x16x8xf32>,
      %c3_104 = arith.constant 3 : index
      %c16_105 = arith.constant 16 : index
      %c0_106 = arith.constant 0 : index
      %137 = vector.load %arg7[%c3_104, %c16_105, %c0_106] : memref<6x18x8xf32, #tpu.memory_space<vmem>>, vector<1x1x8xf32>
      %138 = vector.shape_cast %137 : vector<1x1x8xf32> to vector<1x8xf32>
      %139 = vector.shape_cast %99 : vector<1x8xf32> to vector<1x1x8xf32>
      tpu.vector_store %arg7[%c3_104, %c16_105, %c0_106], %139 {strides = array<i32>} : memref<6x18x8xf32, #tpu.memory_space<vmem>>, vector<1x1x8xf32>,
      %140 = vector.extract_strided_slice %98 {offsets = [3, 0], sizes = [1, 8], strides = [1, 1]} : vector<6x8xf32> to vector<1x8xf32>
      %c3_107 = arith.constant 3 : index
      %c17_108 = arith.constant 17 : index
      %c0_109 = arith.constant 0 : index
      %141 = vector.load %arg7[%c3_107, %c17_108, %c0_109] : memref<6x18x8xf32, #tpu.memory_space<vmem>>, vector<1x1x8xf32>
      %142 = vector.shape_cast %141 : vector<1x1x8xf32> to vector<1x8xf32>
      %143 = vector.shape_cast %140 : vector<1x8xf32> to vector<1x1x8xf32>
      tpu.vector_store %arg7[%c3_107, %c17_108, %c0_109], %143 {strides = array<i32>} : memref<6x18x8xf32, #tpu.memory_space<vmem>>, vector<1x1x8xf32>,
      %144 = vector.extract_strided_slice %97 {offsets = [64, 0], sizes = [16, 8], strides = [1, 1]} : vector<96x8xf32> to vector<16x8xf32>
      %c4_110 = arith.constant 4 : index
      %c0_111 = arith.constant 0 : index
      %c0_112 = arith.constant 0 : index
      %145 = vector.load %arg7[%c4_110, %c0_111, %c0_112] : memref<6x18x8xf32, #tpu.memory_space<vmem>>, vector<1x16x8xf32>
      %146 = vector.shape_cast %145 : vector<1x16x8xf32> to vector<16x8xf32>
      %147 = vector.shape_cast %144 : vector<16x8xf32> to vector<1x16x8xf32>
      tpu.vector_store %arg7[%c4_110, %c0_111, %c0_112], %147 {strides = array<i32>} : memref<6x18x8xf32, #tpu.memory_space<vmem>>, vector<1x16x8xf32>,
      %c4_113 = arith.constant 4 : index
      %c16_114 = arith.constant 16 : index
      %c0_115 = arith.constant 0 : index
      %148 = vector.load %arg7[%c4_113, %c16_114, %c0_115] : memref<6x18x8xf32, #tpu.memory_space<vmem>>, vector<1x1x8xf32>
      %149 = vector.shape_cast %148 : vector<1x1x8xf32> to vector<1x8xf32>
      %150 = vector.shape_cast %99 : vector<1x8xf32> to vector<1x1x8xf32>
      tpu.vector_store %arg7[%c4_113, %c16_114, %c0_115], %150 {strides = array<i32>} : memref<6x18x8xf32, #tpu.memory_space<vmem>>, vector<1x1x8xf32>,
      %151 = vector.extract_strided_slice %98 {offsets = [4, 0], sizes = [1, 8], strides = [1, 1]} : vector<6x8xf32> to vector<1x8xf32>
      %c4_116 = arith.constant 4 : index
      %c17_117 = arith.constant 17 : index
      %c0_118 = arith.constant 0 : index
      %152 = vector.load %arg7[%c4_116, %c17_117, %c0_118] : memref<6x18x8xf32, #tpu.memory_space<vmem>>, vector<1x1x8xf32>
      %153 = vector.shape_cast %152 : vector<1x1x8xf32> to vector<1x8xf32>
      %154 = vector.shape_cast %151 : vector<1x8xf32> to vector<1x1x8xf32>
      tpu.vector_store %arg7[%c4_116, %c17_117, %c0_118], %154 {strides = array<i32>} : memref<6x18x8xf32, #tpu.memory_space<vmem>>, vector<1x1x8xf32>,
      %155 = vector.extract_strided_slice %97 {offsets = [80, 0], sizes = [16, 8], strides = [1, 1]} : vector<96x8xf32> to vector<16x8xf32>
      %c5_119 = arith.constant 5 : index
      %c0_120 = arith.constant 0 : index
      %c0_121 = arith.constant 0 : index
      %156 = vector.load %arg7[%c5_119, %c0_120, %c0_121] : memref<6x18x8xf32, #tpu.memory_space<vmem>>, vector<1x16x8xf32>
      %157 = vector.shape_cast %156 : vector<1x16x8xf32> to vector<16x8xf32>
      %158 = vector.shape_cast %155 : vector<16x8xf32> to vector<1x16x8xf32>
      tpu.vector_store %arg7[%c5_119, %c0_120, %c0_121], %158 {strides = array<i32>} : memref<6x18x8xf32, #tpu.memory_space<vmem>>, vector<1x16x8xf32>,
      %c5_122 = arith.constant 5 : index
      %c16_123 = arith.constant 16 : index
      %c0_124 = arith.constant 0 : index
      %159 = vector.load %arg7[%c5_122, %c16_123, %c0_124] : memref<6x18x8xf32, #tpu.memory_space<vmem>>, vector<1x1x8xf32>
      %160 = vector.shape_cast %159 : vector<1x1x8xf32> to vector<1x8xf32>
      %161 = vector.shape_cast %99 : vector<1x8xf32> to vector<1x1x8xf32>
      tpu.vector_store %arg7[%c5_122, %c16_123, %c0_124], %161 {strides = array<i32>} : memref<6x18x8xf32, #tpu.memory_space<vmem>>, vector<1x1x8xf32>,
      %162 = vector.extract_strided_slice %98 {offsets = [5, 0], sizes = [1, 8], strides = [1, 1]} : vector<6x8xf32> to vector<1x8xf32>
      %c5_125 = arith.constant 5 : index
      %c17_126 = arith.constant 17 : index
      %c0_127 = arith.constant 0 : index
      %163 = vector.load %arg7[%c5_125, %c17_126, %c0_127] : memref<6x18x8xf32, #tpu.memory_space<vmem>>, vector<1x1x8xf32>
      %164 = vector.shape_cast %163 : vector<1x1x8xf32> to vector<1x8xf32>
      %165 = vector.shape_cast %162 : vector<1x8xf32> to vector<1x1x8xf32>
      tpu.vector_store %arg7[%c5_125, %c17_126, %c0_127], %165 {strides = array<i32>} : memref<6x18x8xf32, #tpu.memory_space<vmem>>, vector<1x1x8xf32>,
    } else {
    }
    %c8_i32 = arith.constant 8 : i32
    %3 = arith.muli %arg1, %c8_i32 : i32
    %4 = tpu.assume_multiple %3, 8 : i32
    %5 = arith.index_cast %4 : i32 to index
    %c0 = arith.constant 0 : index
    %6 = vector.load %arg6[%5, %c0] : memref<8x128xf32, #tpu.memory_space<vmem>>, vector<8x128xf32>
    %7 = vector.extract_strided_slice %6 {offsets = [0, 96], sizes = [8, 6], strides = [1, 1]} : vector<8x128xf32> to vector<8x6xf32>
    %c0_1 = arith.constant 0 : index
    %c0_2 = arith.constant 0 : index
    %8 = vector.load %arg8[%c0_1, %c0_2] : memref<2x6xf32, #tpu.memory_space<vmem>>, vector<1x6xf32>
    %c1 = arith.constant 1 : index
    %c0_3 = arith.constant 0 : index
    %9 = vector.load %arg8[%c1, %c0_3] : memref<2x6xf32, #tpu.memory_space<vmem>>, vector<1x6xf32>
    %10 = vector.broadcast %8 : vector<1x6xf32> to vector<8x6xf32>
    %11 = arith.mulf %7, %10 : vector<8x6xf32>
    %12 = vector.broadcast %9 : vector<1x6xf32> to vector<8x6xf32>
    %13 = arith.mulf %7, %12 : vector<8x6xf32>
    %14 = arith.maximumf %11, %13 : vector<8x6xf32>
    %15 = vector.extract_strided_slice %7 {offsets = [0, 0], sizes = [8, 1], strides = [1, 1]} : vector<8x6xf32> to vector<8x1xf32>
    %c0_4 = arith.constant 0 : index
    %c0_5 = arith.constant 0 : index
    %c0_6 = arith.constant 0 : index
    %16 = vector.load %arg9[%c0_4, %c0_5, %c0_6] : memref<6x8x2xf32, #tpu.memory_space<vmem>>, vector<1x8x1xf32>
    %17 = vector.shape_cast %16 : vector<1x8x1xf32> to vector<8x1xf32>
    %18 = vector.shape_cast %15 : vector<8x1xf32> to vector<1x8x1xf32>
    tpu.vector_store %arg9[%c0_4, %c0_5, %c0_6], %18 {strides = array<i32>} : memref<6x8x2xf32, #tpu.memory_space<vmem>>, vector<1x8x1xf32>,
    %19 = vector.extract_strided_slice %14 {offsets = [0, 0], sizes = [8, 1], strides = [1, 1]} : vector<8x6xf32> to vector<8x1xf32>
    %c0_7 = arith.constant 0 : index
    %c0_8 = arith.constant 0 : index
    %c1_9 = arith.constant 1 : index
    %20 = vector.load %arg9[%c0_7, %c0_8, %c1_9] : memref<6x8x2xf32, #tpu.memory_space<vmem>>, vector<1x8x1xf32>
    %21 = vector.shape_cast %20 : vector<1x8x1xf32> to vector<8x1xf32>
    %22 = vector.shape_cast %19 : vector<8x1xf32> to vector<1x8x1xf32>
    tpu.vector_store %arg9[%c0_7, %c0_8, %c1_9], %22 {strides = array<i32>} : memref<6x8x2xf32, #tpu.memory_space<vmem>>, vector<1x8x1xf32>,
    %23 = vector.extract_strided_slice %7 {offsets = [0, 1], sizes = [8, 1], strides = [1, 1]} : vector<8x6xf32> to vector<8x1xf32>
    %c1_10 = arith.constant 1 : index
    %c0_11 = arith.constant 0 : index
    %c0_12 = arith.constant 0 : index
    %24 = vector.load %arg9[%c1_10, %c0_11, %c0_12] : memref<6x8x2xf32, #tpu.memory_space<vmem>>, vector<1x8x1xf32>
    %25 = vector.shape_cast %24 : vector<1x8x1xf32> to vector<8x1xf32>
    %26 = vector.shape_cast %23 : vector<8x1xf32> to vector<1x8x1xf32>
    tpu.vector_store %arg9[%c1_10, %c0_11, %c0_12], %26 {strides = array<i32>} : memref<6x8x2xf32, #tpu.memory_space<vmem>>, vector<1x8x1xf32>,
    %27 = vector.extract_strided_slice %14 {offsets = [0, 1], sizes = [8, 1], strides = [1, 1]} : vector<8x6xf32> to vector<8x1xf32>
    %c1_13 = arith.constant 1 : index
    %c0_14 = arith.constant 0 : index
    %c1_15 = arith.constant 1 : index
    %28 = vector.load %arg9[%c1_13, %c0_14, %c1_15] : memref<6x8x2xf32, #tpu.memory_space<vmem>>, vector<1x8x1xf32>
    %29 = vector.shape_cast %28 : vector<1x8x1xf32> to vector<8x1xf32>
    %30 = vector.shape_cast %27 : vector<8x1xf32> to vector<1x8x1xf32>
    tpu.vector_store %arg9[%c1_13, %c0_14, %c1_15], %30 {strides = array<i32>} : memref<6x8x2xf32, #tpu.memory_space<vmem>>, vector<1x8x1xf32>,
    %31 = vector.extract_strided_slice %7 {offsets = [0, 2], sizes = [8, 1], strides = [1, 1]} : vector<8x6xf32> to vector<8x1xf32>
    %c2 = arith.constant 2 : index
    %c0_16 = arith.constant 0 : index
    %c0_17 = arith.constant 0 : index
    %32 = vector.load %arg9[%c2, %c0_16, %c0_17] : memref<6x8x2xf32, #tpu.memory_space<vmem>>, vector<1x8x1xf32>
    %33 = vector.shape_cast %32 : vector<1x8x1xf32> to vector<8x1xf32>
    %34 = vector.shape_cast %31 : vector<8x1xf32> to vector<1x8x1xf32>
    tpu.vector_store %arg9[%c2, %c0_16, %c0_17], %34 {strides = array<i32>} : memref<6x8x2xf32, #tpu.memory_space<vmem>>, vector<1x8x1xf32>,
    %35 = vector.extract_strided_slice %14 {offsets = [0, 2], sizes = [8, 1], strides = [1, 1]} : vector<8x6xf32> to vector<8x1xf32>
    %c2_18 = arith.constant 2 : index
    %c0_19 = arith.constant 0 : index
    %c1_20 = arith.constant 1 : index
    %36 = vector.load %arg9[%c2_18, %c0_19, %c1_20] : memref<6x8x2xf32, #tpu.memory_space<vmem>>, vector<1x8x1xf32>
    %37 = vector.shape_cast %36 : vector<1x8x1xf32> to vector<8x1xf32>
    %38 = vector.shape_cast %35 : vector<8x1xf32> to vector<1x8x1xf32>
    tpu.vector_store %arg9[%c2_18, %c0_19, %c1_20], %38 {strides = array<i32>} : memref<6x8x2xf32, #tpu.memory_space<vmem>>, vector<1x8x1xf32>,
    %39 = vector.extract_strided_slice %7 {offsets = [0, 3], sizes = [8, 1], strides = [1, 1]} : vector<8x6xf32> to vector<8x1xf32>
    %c3 = arith.constant 3 : index
    %c0_21 = arith.constant 0 : index
    %c0_22 = arith.constant 0 : index
    %40 = vector.load %arg9[%c3, %c0_21, %c0_22] : memref<6x8x2xf32, #tpu.memory_space<vmem>>, vector<1x8x1xf32>
    %41 = vector.shape_cast %40 : vector<1x8x1xf32> to vector<8x1xf32>
    %42 = vector.shape_cast %39 : vector<8x1xf32> to vector<1x8x1xf32>
    tpu.vector_store %arg9[%c3, %c0_21, %c0_22], %42 {strides = array<i32>} : memref<6x8x2xf32, #tpu.memory_space<vmem>>, vector<1x8x1xf32>,
    %43 = vector.extract_strided_slice %14 {offsets = [0, 3], sizes = [8, 1], strides = [1, 1]} : vector<8x6xf32> to vector<8x1xf32>
    %c3_23 = arith.constant 3 : index
    %c0_24 = arith.constant 0 : index
    %c1_25 = arith.constant 1 : index
    %44 = vector.load %arg9[%c3_23, %c0_24, %c1_25] : memref<6x8x2xf32, #tpu.memory_space<vmem>>, vector<1x8x1xf32>
    %45 = vector.shape_cast %44 : vector<1x8x1xf32> to vector<8x1xf32>
    %46 = vector.shape_cast %43 : vector<8x1xf32> to vector<1x8x1xf32>
    tpu.vector_store %arg9[%c3_23, %c0_24, %c1_25], %46 {strides = array<i32>} : memref<6x8x2xf32, #tpu.memory_space<vmem>>, vector<1x8x1xf32>,
    %47 = vector.extract_strided_slice %7 {offsets = [0, 4], sizes = [8, 1], strides = [1, 1]} : vector<8x6xf32> to vector<8x1xf32>
    %c4 = arith.constant 4 : index
    %c0_26 = arith.constant 0 : index
    %c0_27 = arith.constant 0 : index
    %48 = vector.load %arg9[%c4, %c0_26, %c0_27] : memref<6x8x2xf32, #tpu.memory_space<vmem>>, vector<1x8x1xf32>
    %49 = vector.shape_cast %48 : vector<1x8x1xf32> to vector<8x1xf32>
    %50 = vector.shape_cast %47 : vector<8x1xf32> to vector<1x8x1xf32>
    tpu.vector_store %arg9[%c4, %c0_26, %c0_27], %50 {strides = array<i32>} : memref<6x8x2xf32, #tpu.memory_space<vmem>>, vector<1x8x1xf32>,
    %51 = vector.extract_strided_slice %14 {offsets = [0, 4], sizes = [8, 1], strides = [1, 1]} : vector<8x6xf32> to vector<8x1xf32>
    %c4_28 = arith.constant 4 : index
    %c0_29 = arith.constant 0 : index
    %c1_30 = arith.constant 1 : index
    %52 = vector.load %arg9[%c4_28, %c0_29, %c1_30] : memref<6x8x2xf32, #tpu.memory_space<vmem>>, vector<1x8x1xf32>
    %53 = vector.shape_cast %52 : vector<1x8x1xf32> to vector<8x1xf32>
    %54 = vector.shape_cast %51 : vector<8x1xf32> to vector<1x8x1xf32>
    tpu.vector_store %arg9[%c4_28, %c0_29, %c1_30], %54 {strides = array<i32>} : memref<6x8x2xf32, #tpu.memory_space<vmem>>, vector<1x8x1xf32>,
    %55 = vector.extract_strided_slice %7 {offsets = [0, 5], sizes = [8, 1], strides = [1, 1]} : vector<8x6xf32> to vector<8x1xf32>
    %c5 = arith.constant 5 : index
    %c0_31 = arith.constant 0 : index
    %c0_32 = arith.constant 0 : index
    %56 = vector.load %arg9[%c5, %c0_31, %c0_32] : memref<6x8x2xf32, #tpu.memory_space<vmem>>, vector<1x8x1xf32>
    %57 = vector.shape_cast %56 : vector<1x8x1xf32> to vector<8x1xf32>
    %58 = vector.shape_cast %55 : vector<8x1xf32> to vector<1x8x1xf32>
    tpu.vector_store %arg9[%c5, %c0_31, %c0_32], %58 {strides = array<i32>} : memref<6x8x2xf32, #tpu.memory_space<vmem>>, vector<1x8x1xf32>,
    %59 = vector.extract_strided_slice %14 {offsets = [0, 5], sizes = [8, 1], strides = [1, 1]} : vector<8x6xf32> to vector<8x1xf32>
    %c5_33 = arith.constant 5 : index
    %c0_34 = arith.constant 0 : index
    %c1_35 = arith.constant 1 : index
    %60 = vector.load %arg9[%c5_33, %c0_34, %c1_35] : memref<6x8x2xf32, #tpu.memory_space<vmem>>, vector<1x8x1xf32>
    %61 = vector.shape_cast %60 : vector<1x8x1xf32> to vector<8x1xf32>
    %62 = vector.shape_cast %59 : vector<8x1xf32> to vector<1x8x1xf32>
    tpu.vector_store %arg9[%c5_33, %c0_34, %c1_35], %62 {strides = array<i32>} : memref<6x8x2xf32, #tpu.memory_space<vmem>>, vector<1x8x1xf32>,
    %c0_i32_36 = arith.constant 0 : i32
    %c6_i32 = arith.constant 6 : i32
    %63 = arith.addi %c0_i32_36, %c6_i32 : i32
    %c1_i32 = arith.constant 1 : i32
    scf.for %arg11 = %c0_i32_36 to %63 step %c1_i32  : i32 {
      %81 = arith.index_cast %arg11 : i32 to index
      %c0_59 = arith.constant 0 : index
      %c0_60 = arith.constant 0 : index
      %82 = vector.load %arg7[%81, %c0_59, %c0_60] : memref<6x18x8xf32, #tpu.memory_space<vmem>>, vector<1x18x8xf32>
      %83 = vector.shape_cast %82 : vector<1x18x8xf32> to vector<18x8xf32>
      %84 = vector.extract_strided_slice %83 {offsets = [0, 0], sizes = [17, 8], strides = [1, 1]} : vector<18x8xf32> to vector<17x8xf32>
      %85 = tpu.transpose %84, [1, 0] : vector<17x8xf32> -> vector<8x17xf32>
      %86 = vector.extract_strided_slice %83 {offsets = [17, 0], sizes = [1, 8], strides = [1, 1]} : vector<18x8xf32> to vector<1x8xf32>
      %87 = arith.index_cast %arg11 : i32 to index
      %c0_61 = arith.constant 0 : index
      %c0_62 = arith.constant 0 : index
      %88 = vector.load %arg9[%87, %c0_61, %c0_62] : memref<6x8x2xf32, #tpu.memory_space<vmem>>, vector<1x8x2xf32>
      %89 = vector.shape_cast %88 : vector<1x8x2xf32> to vector<8x2xf32>
      %90 = vector.extract_strided_slice %89 {offsets = [0, 0], sizes = [8, 1], strides = [1, 1]} : vector<8x2xf32> to vector<8x1xf32>
      %91 = vector.broadcast %90 : vector<8x1xf32> to vector<8x8xf32>
      %92 = vector.broadcast %86 : vector<1x8xf32> to vector<8x8xf32>
      %93 = arith.mulf %91, %92 : vector<8x8xf32>
      %94 = vector.extract_strided_slice %89 {offsets = [0, 1], sizes = [8, 1], strides = [1, 1]} : vector<8x2xf32> to vector<8x1xf32>
      %95 = vector.broadcast %94 : vector<8x1xf32> to vector<8x8xf32>
      %96 = arith.subf %93, %95 : vector<8x8xf32>
      %97 = math.exp %96 : vector<8x8xf32>
      %cst_63 = arith.constant dense<0.000000e+00> : vector<8x17xf32>
      %98 = tpu.matmul %97, %85, %cst_63 {dimension_numbers = #tpu.dot_dimension_numbers<[1], [0], [0], [1], [0, 0, 1, 1], [], []>} : vector<8x8xf32>, vector<8x17xf32>, vector<8x17xf32> -> vector<8x17xf32>
      %99 = vector.extract_strided_slice %98 {offsets = [0, 0], sizes = [8, 16], strides = [1, 1]} : vector<8x17xf32> to vector<8x16xf32>
      %100 = vector.extract_strided_slice %98 {offsets = [0, 16], sizes = [8, 1], strides = [1, 1]} : vector<8x17xf32> to vector<8x1xf32>
      %101 = tpu.reciprocal %100 : vector<8x1xf32> -> vector<8x1xf32>
      %102 = vector.broadcast %101 : vector<8x1xf32> to vector<8x16xf32>
      %103 = arith.mulf %99, %102 : vector<8x16xf32>
      %104 = arith.index_cast %arg11 : i32 to index
      %c0_64 = arith.constant 0 : index
      %c0_65 = arith.constant 0 : index
      %105 = vector.load %arg10[%104, %c0_64, %c0_65] : memref<6x8x16xf32, #tpu.memory_space<vmem>>, vector<1x8x16xf32>
      %106 = vector.shape_cast %105 : vector<1x8x16xf32> to vector<8x16xf32>
      %107 = vector.shape_cast %103 : vector<8x16xf32> to vector<1x8x16xf32>
      tpu.vector_store %arg10[%104, %c0_64, %c0_65], %107 {strides = array<i32>} : memref<6x8x16xf32, #tpu.memory_space<vmem>>, vector<1x8x16xf32>,
    }
    %c6_i32_37 = arith.constant 6 : i32
    %c0_38 = arith.constant 0 : index
    %c0_39 = arith.constant 0 : index
    %c0_40 = arith.constant 0 : index
    %64 = vector.load %arg10[%c0_38, %c0_39, %c0_40] : memref<6x8x16xf32, #tpu.memory_space<vmem>>, vector<1x8x16xf32>
    %65 = vector.shape_cast %64 : vector<1x8x16xf32> to vector<8x16xf32>
    %c1_41 = arith.constant 1 : index
    %c0_42 = arith.constant 0 : index
    %c0_43 = arith.constant 0 : index
    %66 = vector.load %arg10[%c1_41, %c0_42, %c0_43] : memref<6x8x16xf32, #tpu.memory_space<vmem>>, vector<1x8x16xf32>
    %67 = vector.shape_cast %66 : vector<1x8x16xf32> to vector<8x16xf32>
    %c2_44 = arith.constant 2 : index
    %c0_45 = arith.constant 0 : index
    %c0_46 = arith.constant 0 : index
    %68 = vector.load %arg10[%c2_44, %c0_45, %c0_46] : memref<6x8x16xf32, #tpu.memory_space<vmem>>, vector<1x8x16xf32>
    %69 = vector.shape_cast %68 : vector<1x8x16xf32> to vector<8x16xf32>
    %c3_47 = arith.constant 3 : index
    %c0_48 = arith.constant 0 : index
    %c0_49 = arith.constant 0 : index
    %70 = vector.load %arg10[%c3_47, %c0_48, %c0_49] : memref<6x8x16xf32, #tpu.memory_space<vmem>>, vector<1x8x16xf32>
    %71 = vector.shape_cast %70 : vector<1x8x16xf32> to vector<8x16xf32>
    %c4_50 = arith.constant 4 : index
    %c0_51 = arith.constant 0 : index
    %c0_52 = arith.constant 0 : index
    %72 = vector.load %arg10[%c4_50, %c0_51, %c0_52] : memref<6x8x16xf32, #tpu.memory_space<vmem>>, vector<1x8x16xf32>
    %73 = vector.shape_cast %72 : vector<1x8x16xf32> to vector<8x16xf32>
    %c5_53 = arith.constant 5 : index
    %c0_54 = arith.constant 0 : index
    %c0_55 = arith.constant 0 : index
    %74 = vector.load %arg10[%c5_53, %c0_54, %c0_55] : memref<6x8x16xf32, #tpu.memory_space<vmem>>, vector<1x8x16xf32>
    %75 = vector.shape_cast %74 : vector<1x8x16xf32> to vector<8x16xf32>
    %cst = arith.constant 0.000000e+00 : f32
    %76 = vector.broadcast %cst : f32 to vector<8x32xf32>
    %77 = tpu.concatenate %65, %67, %69, %71, %73, %75, %76 in 1 : vector<8x16xf32>, vector<8x16xf32>, vector<8x16xf32>, vector<8x16xf32>, vector<8x16xf32>, vector<8x16xf32>, vector<8x32xf32> -> vector<8x128xf32>
    %c0_56 = arith.constant 0 : index
    %c0_57 = arith.constant 0 : index
    %c0_58 = arith.constant 0 : index
    %78 = vector.load %arg5[%c0_56, %c0_57, %c0_58] : memref<1x8x128xf32, #tpu.memory_space<vmem>>, vector<1x8x128xf32>
    %79 = vector.shape_cast %78 : vector<1x8x128xf32> to vector<8x128xf32>
    %80 = vector.shape_cast %77 : vector<8x128xf32> to vector<1x8x128xf32>
    tpu.vector_store %arg5[%c0_56, %c0_57, %c0_58], %80 {strides = array<i32>} : memref<1x8x128xf32, #tpu.memory_space<vmem>>, vector<1x8x128xf32>,
    return
  }
  func.func @transform_0(%arg0: i32, %arg1: i32) -> (i32, i32, i32) {
    %c0_i32 = arith.constant 0 : i32
    %c0_i32_0 = arith.constant 0 : i32
    %c0_i32_1 = arith.constant 0 : i32
    return %arg0, %c0_i32, %c0_i32_0 : i32, i32, i32
  }
  func.func @transform_1(%arg0: i32, %arg1: i32) -> (i32, i32) {
    %c0_i32 = arith.constant 0 : i32
    %c0_i32_0 = arith.constant 0 : i32
    %c0_i32_1 = arith.constant 0 : i32
    return %c0_i32, %c0_i32_0 : i32, i32
  }
  func.func @transform_2(%arg0: i32, %arg1: i32) -> (i32, i32) {
    %c0_i32 = arith.constant 0 : i32
    %c0_i32_0 = arith.constant 0 : i32
    %c0_i32_1 = arith.constant 0 : i32
    return %c0_i32, %c0_i32_0 : i32, i32
  }
  func.func @transform_3(%arg0: i32, %arg1: i32) -> (i32, i32, i32) {
    %c0_i32 = arith.constant 0 : i32
    %c0_i32_0 = arith.constant 0 : i32
    return %arg0, %arg1, %c0_i32 : i32, i32, i32
  }
}

</mosaic_0001>

<llo_original>
// kernel: tpu_custom_call.1
$region0: #{tpu_custom_call.1}
  #allocation0 [shape = 'u32[]', space=smem, size = 0x4, offset = 0x4, fixed_abs, tag = 'smem constant byte address 0x4 - core index']
  #allocation1 [shape = 'u32[144,128]{1,0:T(1,128)}', space=vmem, size = 0x12000, scoped, tag = 'internal scratch']
  #allocation2 [shape = 'f32[8,128]{1,0:T(8,128)}', space=vmem, size = 0x1000, scoped, tag = 'scratch operand']
  #allocation3 [shape = 'f32[6,18,8]{2,1,0:T(8,128)}', space=vmem, size = 0x12000, scoped, tag = 'scratch operand']
  #allocation4 [shape = 'f32[2,6]{1,0:T(2,128)}', space=vmem, size = 0x400, scoped, tag = 'scratch operand']
  #allocation5 [shape = 'f32[6,8,2]{2,1,0:T(8,128)}', space=vmem, size = 0x6000, scoped, tag = 'scratch operand']
  #allocation6 [shape = 'f32[6,8,16]{2,1,0:T(8,128)}', space=vmem, size = 0x6000, scoped, tag = 'scratch operand']
  %s0 = inlined_call_operand.hbm [shape: f32[2,8,384], index: 0, kind: input, shape index: {}]
  %s1 = inlined_call_operand.hbm [shape: f32[384,128], index: 1, kind: input, shape index: {}]
  %s2 = inlined_call_operand.vmem [shape: f32[1,128], index: 2, kind: input, shape index: {}]
  %s3 = inlined_call_operand.hbm [shape: f32[2,8,128], index: 3, kind: output, shape index: {}]
  %s4 = sld [smem:[#allocation0]]
  $region64: #{tpu_custom_call.1} parent=0
    _
  %s6 = ssub.s32 1, %s4
  %s7 = scalar_select 0, %s6, %s4
  $region1: #{tpu_custom_call.1} parent=0
    #allocation7 [shape = 'u8[24576]{0}', space=vmem, size = 0x6000, scoped, tag = 'input window, operand 0']
    #allocation8 [shape = 's32[2]{0}', space=sflag, size = 0x8, scoped, tag = 'scoped memory for tpu_custom_call.1']
    #allocation9 [shape = 's32[2]{0}', space=sflag, size = 0x8, scoped, tag = 'scoped memory for tpu_custom_call.1']
    #allocation10 [shape = 'u8[196608]{0}', space=vmem, size = 0x30000, scoped, tag = 'input window, operand 1, single buffered']
    #allocation11 [shape = 's32[1]{0}', space=sflag, size = 0x4, scoped, tag = 'scoped memory for tpu_custom_call.1']
    #allocation12 [shape = 'u8[8192]{0}', space=vmem, size = 0x2000, scoped, tag = 'output window, operand 0']
    %8 = vsyncpa [#allocation8], 0
    %s9 = scalar_lea.sflag [#allocation8], 1
    %10 = vsyncpa %s9, 0
    %11 = vsyncpa [#allocation11], 0
    %12 = vsyncpa [#allocation9], 0
    %s13 = scalar_lea.sflag [#allocation9], 1
    %14 = vsyncpa %s13, 0
    loop: start=0, step=1, limit=4
    $region2: #{tpu_custom_call.1} parent=1 // loop_pre_header
      _
    $region3: #{tpu_custom_call.1} parent=1 // loop_header
      %s16 = sphi 0, %s20
      %p17 = scmp.ge.s32.totalorder %s16, 4
      %s23 = sphi 0, %s35
      %s24 = sphi 0, %s31
      %s25 = sphi 0, %s23
      %s26 = sphi 0, %s24
      %s27 = sphi 0, %s25
      %s28 = sphi 0, %s26
      %s38 = sphi 0, %s40
      %s41 = sphi 0, %s38
      %s42 = sphi 0, %s41
      %s58 = sphi 0, %s42
      %s62 = sphi 0, %s62
      %s64 = sphi 0, %s62
      %s65 = sphi 0, %s64
      %s79 = sphi 0, %s65
      %s83 = sphi 0, %s83
      %s85 = sphi 0, %s83
      %s86 = sphi 0, %s85
      %s100 = sphi 0, %s86
      %s108 = sphi 0, %s110
      %s111 = sphi 0, %s108
      %s112 = sphi 0, %s111
      %s128 = sphi 0, %s112
    $region4: #{tpu_custom_call.1} parent=1 // loop_header_branch
      %19 = sbr.rel (%p17) target = $region8
    $region5: #{tpu_custom_call.1} parent=1 // loop_body
      %s21 = ssub.s32 %s16, 1
      %s22 = ssub.s32 %s16, 2
      %s29 = sadd.s32 1, %s24
      %p30 = scmp.ge.s32.totalorder %s29, 1
      %s31 = scalar_select %p30, 0, %s29
      %s32 = sadd.s32 1, %s23
      %s33 = scalar_select %p30, %s32, %s23
      %p34 = scmp.ge.s32.totalorder %s33, 2
      %s35 = scalar_select %p34, 0, %s33
      %s36 = ssub.s32 %s23, %s35
      %p37 = scmp.eq.s32.totalorder %s36, 0
      %s39 = sadd.s32 %s38, 1
      %s40 = scalar_select %p37, %s38, %s39
      %p43 = pneg %p37
      %p44 = scmp.eq.s32.totalorder %s16, 1
      %p45 = por %p43, %p44
      %p46 = scmp.ne.s32.totalorder %s38, %s41
      %p47 = scmp.eq.s32.totalorder %s16, 0
      %p48 = por %p46, %p47
      %p49 = scmp.ne.s32.totalorder %s38, %s41
      %p50 = scmp.eq.s32.totalorder %s21, 1
      %p51 = por %p49, %p50
      %p52 = scmp.ne.s32.totalorder %s41, %s42
      %p53 = scmp.eq.s32.totalorder %s21, 0
      %p54 = por %p52, %p53
      %p55 = scmp.ne.s32.totalorder %s41, %s42
      %p56 = scmp.eq.s32.totalorder %s22, 1
      %p57 = por %p55, %p56
      %p59 = scmp.ne.s32.totalorder %s42, %s58
      %p60 = scmp.eq.s32.totalorder %s22, 0
      %p61 = por %p59, %p60
      %s63 = sadd.s32 %s62, 1
      %p66 = scmp.eq.s32.totalorder %s16, 1
      %p67 = scmp.ne.s32.totalorder %s62, %s64
      %p68 = scmp.eq.s32.totalorder %s16, 0
      %p69 = por %p67, %p68
      %p70 = scmp.ne.s32.totalorder %s62, %s64
      %p71 = scmp.eq.s32.totalorder %s21, 1
      %p72 = por %p70, %p71
      %p73 = scmp.ne.s32.totalorder %s64, %s65
      %p74 = scmp.eq.s32.totalorder %s21, 0
      %p75 = por %p73, %p74
      %p76 = scmp.ne.s32.totalorder %s64, %s65
      %p77 = scmp.eq.s32.totalorder %s22, 1
      %p78 = por %p76, %p77
      %p80 = scmp.ne.s32.totalorder %s65, %s79
      %p81 = scmp.eq.s32.totalorder %s22, 0
      %p82 = por %p80, %p81
      %s84 = sadd.s32 %s83, 1
      %p87 = scmp.eq.s32.totalorder %s16, 1
      %p88 = scmp.ne.s32.totalorder %s83, %s85
      %p89 = scmp.eq.s32.totalorder %s16, 0
      %p90 = por %p88, %p89
      %p91 = scmp.ne.s32.totalorder %s83, %s85
      %p92 = scmp.eq.s32.totalorder %s21, 1
      %p93 = por %p91, %p92
      %p94 = scmp.ne.s32.totalorder %s85, %s86
      %p95 = scmp.eq.s32.totalorder %s21, 0
      %p96 = por %p94, %p95
      %p97 = scmp.ne.s32.totalorder %s85, %s86
      %p98 = scmp.eq.s32.totalorder %s22, 1
      %p99 = por %p97, %p98
      %p101 = scmp.ne.s32.totalorder %s86, %s100
      %p102 = scmp.eq.s32.totalorder %s22, 0
      %p103 = por %p101, %p102
      %s104 = ssub.s32 %s23, %s35
      %s105 = ssub.s32 %s24, %s31
      %s106 = sor.u32 %s104, %s105
      %p107 = scmp.eq.s32.totalorder %s106, 0
      %s109 = sadd.s32 %s108, 1
      %s110 = scalar_select %p107, %s108, %s109
      %p113 = pneg %p107
      %p114 = scmp.eq.s32.totalorder %s16, 1
      %p115 = por %p113, %p114
      %p116 = scmp.ne.s32.totalorder %s108, %s111
      %p117 = scmp.eq.s32.totalorder %s16, 0
      %p118 = por %p116, %p117
      %p119 = scmp.ne.s32.totalorder %s108, %s111
      %p120 = scmp.eq.s32.totalorder %s21, 1
      %p121 = por %p119, %p120
      %p122 = scmp.ne.s32.totalorder %s111, %s112
      %p123 = scmp.eq.s32.totalorder %s21, 0
      %p124 = por %p122, %p123
      %p125 = scmp.ne.s32.totalorder %s111, %s112
      %p126 = scmp.eq.s32.totalorder %s22, 1
      %p127 = por %p125, %p126
      %p129 = scmp.ne.s32.totalorder %s112, %s128
      %p130 = scmp.eq.s32.totalorder %s22, 0
      %p131 = por %p129, %p130
      %p132 = scmp.le.s32.totalorder 1, %s16
      %p133 = scmp.lt.s32.totalorder %s16, 3
      %p134 = pnand %p132, %p133
      %p135 = pneg %p134
      // Predicated region
      $region9: #{tpu_custom_call.1} parent=5 // pred_check
        _
      $region10: #{tpu_custom_call.1} parent=5 // pred_check_branch
        %137 = sbr.rel (%p134) target = $region12
      $region11: #{tpu_custom_call.1} parent=5 // pred_region
        %s138 = ssub.s32 %s16, 1
        // Predicated region
        $region13: #{tpu_custom_call.1} parent=11 // pred_check
          %p139 = pneg %p75
        $region14: #{tpu_custom_call.1} parent=11 // pred_check_branch
          %141 = sbr.rel (%p139) target = $region16
        $region15: #{tpu_custom_call.1} parent=11 // pred_region
          %s143 = ssub.s32 6144, 6144
          %144 = vsyncadd [#allocation11], %s143
          %s145 = sshll.u32 [#allocation10], 4
          %s146 = int_to_ptr.vmem [resolvable:$true] %s145
          %151 = dma.hbm_to_vmem [thread:$0]  %s1, 6144, %s146, [#allocation11], 128, 128, 8
        $region16: #{tpu_custom_call.1} parent=11 // pred_fallthru
          _
        // Predicated region
        $region17: #{tpu_custom_call.1} parent=11 // pred_check
          %p152 = pneg %p96
        $region18: #{tpu_custom_call.1} parent=11 // pred_check_branch
          %154 = sbr.rel (%p152) target = $region20
        $region19: #{tpu_custom_call.1} parent=11 // pred_region
          _
        $region20: #{tpu_custom_call.1} parent=11 // pred_fallthru
          _
      $region12: #{tpu_custom_call.1} parent=5 // pred_fallthru
        _
      %p155 = scmp.lt.s32.totalorder %s16, 2
      // Predicated region
      $region21: #{tpu_custom_call.1} parent=5 // pred_check
        %p156 = pneg %p155
      $region22: #{tpu_custom_call.1} parent=5 // pred_check_branch
        %158 = sbr.rel (%p156) target = $region24
      $region23: #{tpu_custom_call.1} parent=5 // pred_region
        // Predicated region
        $region25: #{tpu_custom_call.1} parent=23 // pred_check
          %p159 = pneg %p48
        $region26: #{tpu_custom_call.1} parent=23 // pred_check_branch
          %161 = sbr.rel (%p159) target = $region28
        $region27: #{tpu_custom_call.1} parent=23 // pred_region
          %s162 = sand.u32 %s38, 1
          %s163 = scalar_lea.sflag [#allocation8], %s162
          %s164 = sand.u32 %s38, 1
          %s165 = smul.addr %s164, 24
          %s166 = scalar_lea.vmem [#allocation7], %s165
          %s168 = ssub.s32 384, 384
          %169 = vsyncadd %s163, %s168
          %s170 = smul.addr %s23, 3
          %s171 = smul.addr %s170, 128
          %s172 = scalar_lea.hbm %s0, %s171
          %s174 = sshll.u32 %s166, 4
          %s175 = int_to_ptr.vmem [resolvable:$true] %s174
          %177 = dma.hbm_to_vmem [thread:$0]  %s172, 384, %s175, %s163
        $region28: #{tpu_custom_call.1} parent=23 // pred_fallthru
          _
      $region24: #{tpu_custom_call.1} parent=5 // pred_fallthru
        _
      %p178 = scmp.le.s32.totalorder 1, %s16
      %p179 = scmp.lt.s32.totalorder %s16, 3
      %p180 = pnand %p178, %p179
      %p181 = pneg %p180
      // Predicated region
      $region29: #{tpu_custom_call.1} parent=5 // pred_check
        _
      $region30: #{tpu_custom_call.1} parent=5 // pred_check_branch
        %183 = sbr.rel (%p180) target = $region32
      $region31: #{tpu_custom_call.1} parent=5 // pred_region
        %s184 = ssub.s32 %s16, 1
        %s185 = sand.u32 %s41, 1
        %s186 = scalar_lea.sflag [#allocation8], %s185
        %s187 = sand.u32 %s41, 1
        %s188 = smul.addr %s187, 24
        %s189 = scalar_lea.vmem [#allocation7], %s188
        // Predicated region
        $region33: #{tpu_custom_call.1} parent=31 // pred_check
          %p190 = pneg %p54
        $region34: #{tpu_custom_call.1} parent=31 // pred_check_branch
          %192 = sbr.rel (%p190) target = $region36
        $region35: #{tpu_custom_call.1} parent=31 // pred_region
          %193 = dma.done %s186, 384
        $region36: #{tpu_custom_call.1} parent=31 // pred_fallthru
          _
        // Predicated region
        $region37: #{tpu_custom_call.1} parent=31 // pred_check
          %p194 = pneg %p75
        $region38: #{tpu_custom_call.1} parent=31 // pred_check_branch
          %196 = sbr.rel (%p194) target = $region40
        $region39: #{tpu_custom_call.1} parent=31 // pred_region
          %197 = dma.done [#allocation11], 6144
        $region40: #{tpu_custom_call.1} parent=31 // pred_fallthru
          _
        %s198 = sand.u32 %s41, 1
        %s199 = scalar_lea.sflag [#allocation8], %s198
        %s200 = sand.u32 %s41, 1
        %s201 = smul.addr %s200, 24
        %s202 = scalar_lea.vmem [#allocation7], %s201
        %p203 = pneg %p54
        %p204 = pneg %p51
        %p205 = pneg %p75
        %p206 = pneg %p72
        %p207 = pneg %p96
        %p208 = pneg %p93
        %p209 = pneg %p124
        %p210 = pneg %p121
        %s211 = sand.u32 %s111, 1
        %s212 = scalar_lea.sflag [#allocation9], %s211
        %s213 = sand.u32 %s111, 1
        %s214 = smul.addr %s213, 8
        %s215 = scalar_lea.vmem [#allocation12], %s214
        %p216 = scmp.eq.s32.totalorder %s26, 0
        // Predicated region
        $region41: #{tpu_custom_call.1} parent=31 // pred_check
          %p217 = pneg %p216
        $region42: #{tpu_custom_call.1} parent=31 // pred_check_branch
          %219 = sbr.rel (%p217) target = $region44
        $region43: #{tpu_custom_call.1} parent=31 // pred_region
          %v220 = vld [vmem:[%s189] sm:$0xff]
          %v221 = vld [vmem:[%s189 + $0x8] sm:$0xff]
          %v222 = vld [vmem:[%s189 + $0x10] sm:$0xff]
          %v223 = vld [vmem:[#allocation10] sm:$0xff]
          %v224 = vld [vmem:[#allocation10 + $0x8] sm:$0xff]
          %v225 = vld [vmem:[#allocation10 + $0x10] sm:$0xff]
          %v226 = vld [vmem:[#allocation10 + $0x18] sm:$0xff]
          %v227 = vld [vmem:[#allocation10 + $0x20] sm:$0xff]
          %v228 = vld [vmem:[#allocation10 + $0x28] sm:$0xff]
          %v229 = vld [vmem:[#allocation10 + $0x30] sm:$0xff]
          %v230 = vld [vmem:[#allocation10 + $0x38] sm:$0xff]
          %v231 = vld [vmem:[#allocation10 + $0x40] sm:$0xff]
          %v232 = vld [vmem:[#allocation10 + $0x48] sm:$0xff]
          %v233 = vld [vmem:[#allocation10 + $0x50] sm:$0xff]
          %v234 = vld [vmem:[#allocation10 + $0x58] sm:$0xff]
          %v235 = vld [vmem:[#allocation10 + $0x60] sm:$0xff]
          %v236 = vld [vmem:[#allocation10 + $0x68] sm:$0xff]
          %v237 = vld [vmem:[#allocation10 + $0x70] sm:$0xff]
          %v238 = vld [vmem:[#allocation10 + $0x78] sm:$0xff]
          %v239 = vld [vmem:[#allocation10 + $0x80] sm:$0xff]
          %v240 = vld [vmem:[#allocation10 + $0x88] sm:$0xff]
          %v241 = vld [vmem:[#allocation10 + $0x90] sm:$0xff]
          %v242 = vld [vmem:[#allocation10 + $0x98] sm:$0xff]
          %v243 = vld [vmem:[#allocation10 + $0xa0] sm:$0xff]
          %v244 = vld [vmem:[#allocation10 + $0xa8] sm:$0xff]
          %v245 = vld [vmem:[#allocation10 + $0xb0] sm:$0xff]
          %v246 = vld [vmem:[#allocation10 + $0xb8] sm:$0xff]
          %v247 = vld [vmem:[#allocation10 + $0xc0] sm:$0xff]
          %v248 = vld [vmem:[#allocation10 + $0xc8] sm:$0xff]
          %v249 = vld [vmem:[#allocation10 + $0xd0] sm:$0xff]
          %v250 = vld [vmem:[#allocation10 + $0xd8] sm:$0xff]
          %v251 = vld [vmem:[#allocation10 + $0xe0] sm:$0xff]
          %v252 = vld [vmem:[#allocation10 + $0xe8] sm:$0xff]
          %v253 = vld [vmem:[#allocation10 + $0xf0] sm:$0xff]
          %v254 = vld [vmem:[#allocation10 + $0xf8] sm:$0xff]
          %v255 = vld [vmem:[#allocation10 + $0x100] sm:$0xff]
          %v256 = vld [vmem:[#allocation10 + $0x108] sm:$0xff]
          %v257 = vld [vmem:[#allocation10 + $0x110] sm:$0xff]
          %v258 = vld [vmem:[#allocation10 + $0x118] sm:$0xff]
          %v259 = vld [vmem:[#allocation10 + $0x120] sm:$0xff]
          %v260 = vld [vmem:[#allocation10 + $0x128] sm:$0xff]
          %v261 = vld [vmem:[#allocation10 + $0x130] sm:$0xff]
          %v262 = vld [vmem:[#allocation10 + $0x138] sm:$0xff]
          %v263 = vld [vmem:[#allocation10 + $0x140] sm:$0xff]
          %v264 = vld [vmem:[#allocation10 + $0x148] sm:$0xff]
          %v265 = vld [vmem:[#allocation10 + $0x150] sm:$0xff]
          %v266 = vld [vmem:[#allocation10 + $0x158] sm:$0xff]
          %v267 = vld [vmem:[#allocation10 + $0x160] sm:$0xff]
          %v268 = vld [vmem:[#allocation10 + $0x168] sm:$0xff]
          %v269 = vld [vmem:[#allocation10 + $0x170] sm:$0xff]
          %v270 = vld [vmem:[#allocation10 + $0x178] sm:$0xff]
          %v271 = vld [vmem:[%s2] sm:$0x1]
          %v273 = vlaneseq
          %v274 = vshrl.u32 %v273, 7
          %v275 = vsub.s32 0, %v274
          %v276 = vrot.slane %v271, %v275
          %278 = vmatprep.subr.mxu0 0.0
          %279 = vmatpush1.msra.mxu0 %v238
          %280 = vmatprep.subr.mxu0 0.0
          %281 = vmatpush1.msra.mxu0 %v237
          %282 = vmatprep.subr.mxu0 0.0
          %283 = vmatpush1.msra.mxu0 %v236
          %284 = vmatprep.subr.mxu0 0.0
          %285 = vmatpush1.msra.mxu0 %v235
          %286 = vmatprep.subr.mxu0 0.0
          %287 = vmatpush1.msra.mxu0 %v234
          %288 = vmatprep.subr.mxu0 0.0
          %289 = vmatpush1.msra.mxu0 %v233
          %290 = vmatprep.subr.mxu0 0.0
          %291 = vmatpush1.msra.mxu0 %v232
          %292 = vmatprep.subr.mxu0 0.0
          %293 = vmatpush1.msra.mxu0 %v231
          %294 = vmatprep.subr.mxu0 0.0
          %295 = vmatpush1.msra.mxu0 %v230
          %296 = vmatprep.subr.mxu0 0.0
          %297 = vmatpush1.msra.mxu0 %v229
          %298 = vmatprep.subr.mxu0 0.0
          %299 = vmatpush1.msra.mxu0 %v228
          %300 = vmatprep.subr.mxu0 0.0
          %301 = vmatpush1.msra.mxu0 %v227
          %302 = vmatprep.subr.mxu0 0.0
          %303 = vmatpush1.msra.mxu0 %v226
          %304 = vmatprep.subr.mxu0 0.0
          %305 = vmatpush1.msra.mxu0 %v225
          %306 = vmatprep.subr.mxu0 0.0
          %307 = vmatpush1.msra.mxu0 %v224
          %308 = vmatprep.subr.mxu0 0.0
          %309 = vmatpush1.msra.mxu0 %v223
          %310 = vmatprep.subr.mxu0 0.0
          %311 = vmatpush2.msra.mxu0 %v254
          %312 = vmatprep.subr.mxu0 0.0
          %313 = vmatpush2.msra.mxu0 %v253
          %314 = vmatprep.subr.mxu0 0.0
          %315 = vmatpush2.msra.mxu0 %v252
          %316 = vmatprep.subr.mxu0 0.0
          %317 = vmatpush2.msra.mxu0 %v251
          %318 = vmatprep.subr.mxu0 0.0
          %319 = vmatpush2.msra.mxu0 %v250
          %320 = vmatprep.subr.mxu0 0.0
          %321 = vmatpush2.msra.mxu0 %v249
          %322 = vmatprep.subr.mxu0 0.0
          %323 = vmatpush2.msra.mxu0 %v248
          %324 = vmatprep.subr.mxu0 0.0
          %325 = vmatpush2.msra.mxu0 %v247
          %326 = vmatprep.subr.mxu0 0.0
          %327 = vmatpush2.msra.mxu0 %v246
          %328 = vmatprep.subr.mxu0 0.0
          %329 = vmatpush2.msra.mxu0 %v245
          %330 = vmatprep.subr.mxu0 0.0
          %331 = vmatpush2.msra.mxu0 %v244
          %332 = vmatprep.subr.mxu0 0.0
          %333 = vmatpush2.msra.mxu0 %v243
          %334 = vmatprep.subr.mxu0 0.0
          %335 = vmatpush2.msra.mxu0 %v242
          %336 = vmatprep.subr.mxu0 0.0
          %337 = vmatpush2.msra.mxu0 %v241
          %338 = vmatprep.subr.mxu0 0.0
          %339 = vmatpush2.msra.mxu0 %v240
          %340 = vmatprep.subr.mxu0 0.0
          %341 = vmatpush2.msra.mxu0 %v239
          %342 = vmatprep.mubr.f32.mxu0 %v221
          %343 = vmatmul.mubr.f32.gmra.mxu0 %v220
          %v344 = vpop.f32.mrf.mxu0
          %v345 = vadd.f32 %v276, %v344
          %v346 = vpop.f32.mrf.mxu0
          %347 = vdwg.mxu0
          %348 = vmatprep.subr.mxu0 0.0
          %349 = vmatpush1.msra.mxu0 %v270
          %350 = vmatprep.subr.mxu0 0.0
          %351 = vmatpush1.msra.mxu0 %v269
          %352 = vmatprep.subr.mxu0 0.0
          %353 = vmatpush1.msra.mxu0 %v268
          %354 = vmatprep.subr.mxu0 0.0
          %355 = vmatpush1.msra.mxu0 %v267
          %356 = vmatprep.subr.mxu0 0.0
          %357 = vmatpush1.msra.mxu0 %v266
          %358 = vmatprep.subr.mxu0 0.0
          %359 = vmatpush1.msra.mxu0 %v265
          %360 = vmatprep.subr.mxu0 0.0
          %361 = vmatpush1.msra.mxu0 %v264
          %362 = vmatprep.subr.mxu0 0.0
          %363 = vmatpush1.msra.mxu0 %v263
          %364 = vmatprep.subr.mxu0 0.0
          %365 = vmatpush1.msra.mxu0 %v262
          %366 = vmatprep.subr.mxu0 0.0
          %367 = vmatpush1.msra.mxu0 %v261
          %368 = vmatprep.subr.mxu0 0.0
          %369 = vmatpush1.msra.mxu0 %v260
          %370 = vmatprep.subr.mxu0 0.0
          %371 = vmatpush1.msra.mxu0 %v259
          %372 = vmatprep.subr.mxu0 0.0
          %373 = vmatpush1.msra.mxu0 %v258
          %374 = vmatprep.subr.mxu0 0.0
          %375 = vmatpush1.msra.mxu0 %v257
          %376 = vmatprep.subr.mxu0 0.0
          %377 = vmatpush1.msra.mxu0 %v256
          %378 = vmatprep.subr.mxu0 0.0
          %379 = vmatpush1.msra.mxu0 %v255
          %380 = vmatprep.subr.mxu0 0.0
          %381 = vmatpush2.msra.mxu0 0.0
          %382 = vmatprep.subr.mxu0 0.0
          %383 = vmatpush2.msra.mxu0 0.0
          %384 = vmatprep.subr.mxu0 0.0
          %385 = vmatpush2.msra.mxu0 0.0
          %386 = vmatprep.subr.mxu0 0.0
          %387 = vmatpush2.msra.mxu0 0.0
          %388 = vmatprep.subr.mxu0 0.0
          %389 = vmatpush2.msra.mxu0 0.0
          %390 = vmatprep.subr.mxu0 0.0
          %391 = vmatpush2.msra.mxu0 0.0
          %392 = vmatprep.subr.mxu0 0.0
          %393 = vmatpush2.msra.mxu0 0.0
          %394 = vmatprep.subr.mxu0 0.0
          %395 = vmatpush2.msra.mxu0 0.0
          %396 = vmatprep.subr.mxu0 0.0
          %397 = vmatpush2.msra.mxu0 0.0
          %398 = vmatprep.subr.mxu0 0.0
          %399 = vmatpush2.msra.mxu0 0.0
          %400 = vmatprep.subr.mxu0 0.0
          %401 = vmatpush2.msra.mxu0 0.0
          %402 = vmatprep.subr.mxu0 0.0
          %403 = vmatpush2.msra.mxu0 0.0
          %404 = vmatprep.subr.mxu0 0.0
          %405 = vmatpush2.msra.mxu0 0.0
          %406 = vmatprep.subr.mxu0 0.0
          %407 = vmatpush2.msra.mxu0 0.0
          %408 = vmatprep.subr.mxu0 0.0
          %409 = vmatpush2.msra.mxu0 0.0
          %410 = vmatprep.subr.mxu0 0.0
          %411 = vmatpush2.msra.mxu0 0.0
          %412 = vmatprep.mubr.f32.mxu0 0.0
          %413 = vmatmul.mubr.f32.gmra.mxu0 %v222
          %v414 = vpop.f32.mrf.mxu0
          %v415 = vadd.f32 %v345, %v414
          %v416 = vpop.f32.mrf.mxu0
          %417 = vdwg.mxu0
          %418 = vst [vmem:[#allocation2] sm:$0xff] %v415
          %vm419 = vcmask 884528
          %v420 = vsel %vm419, %v415, -inf
          %v421 = vrot.slane %v420, 4
          %v422 = vmax.f32 %v420, %v421
          %v423 = vrot.slane %v422, 2
          %v424 = vmax.f32 %v422, %v423
          %v425 = vrot.slane %v424, 1
          %v426 = vmax.f32 %v424, %v425
          %428 = vrot.lane.b32.xlu0 %v426, 26
          %v429 = vpop.permute.xlu0 %428
          %vm431 = vcmask 40960
          %432 = vst.msk [vmem:[#allocation4] sm:$0x1] %vm431, %v429
          %v433 = vsel %vm419, %v415, inf
          %v434 = vrot.slane %v433, 4
          %v435 = vmin.f32 %v433, %v434
          %v436 = vrot.slane %v435, 2
          %v437 = vmin.f32 %v435, %v436
          %v438 = vrot.slane %v437, 1
          %v439 = vmin.f32 %v437, %v438
          %441 = vrot.lane.b32.xlu0 %v439, 26
          %v442 = vpop.permute.xlu0 %441
          %444 = vst.msk [vmem:[#allocation4 + $0x1] sm:$0x1] %vm431, %v442
          %445 = vxpose.xlu0.b32.start [1/16] %v415, 128
          %446 = vxpose.xlu0.b32.cont [2/16] 0.0, 128
          %447 = vxpose.xlu0.b32.cont [3/16] 0.0, 128
          %448 = vxpose.xlu0.b32.cont [4/16] 0.0, 128
          %449 = vxpose.xlu0.b32.cont [5/16] 0.0, 128
          %450 = vxpose.xlu0.b32.cont [6/16] 0.0, 128
          %451 = vxpose.xlu0.b32.cont [7/16] 0.0, 128
          %452 = vxpose.xlu0.b32.cont [8/16] 0.0, 128
          %453 = vxpose.xlu0.b32.cont [9/16] 0.0, 128
          %454 = vxpose.xlu0.b32.cont [10/16] 0.0, 128
          %455 = vxpose.xlu0.b32.cont [11/16] 0.0, 128
          %456 = vxpose.xlu0.b32.cont [12/16] 0.0, 128
          %457 = vxpose.xlu0.b32.cont [13/16] 0.0, 128
          %458 = vxpose.xlu0.b32.cont [14/16] 0.0, 128
          %459 = vxpose.xlu0.b32.cont [15/16] 0.0, 128
          %460 = vxpose.xlu0.b32.end [16/16] 0.0, 128
          %v461 = vpop.trf.xlu0
          %v462 = vpop.trf.xlu0
          %v463 = vpop.trf.xlu0
          %v464 = vpop.trf.xlu0
          %v465 = vpop.trf.xlu0
          %v466 = vpop.trf.xlu0
          %v467 = vpop.trf.xlu0
          %v468 = vpop.trf.xlu0
          %v469 = vpop.trf.xlu0
          %v470 = vpop.trf.xlu0
          %v471 = vpop.trf.xlu0
          %v472 = vpop.trf.xlu0
          %v473 = vpop.trf.xlu0
          %v474 = vpop.trf.xlu0
          %v475 = vpop.trf.xlu0
          %v476 = vpop.trf.xlu0
          %478 = vrot.lane.b32.xlu0 %v415, 26
          %v479 = vpop.permute.xlu0 %478
          %481 = vxpose.xlu0.b32.start [1/16] %v479, 128
          %482 = vxpose.xlu0.b32.cont [2/16] 0.0, 128
          %483 = vxpose.xlu0.b32.cont [3/16] 0.0, 128
          %484 = vxpose.xlu0.b32.cont [4/16] 0.0, 128
          %485 = vxpose.xlu0.b32.cont [5/16] 0.0, 128
          %486 = vxpose.xlu0.b32.cont [6/16] 0.0, 128
          %487 = vxpose.xlu0.b32.cont [7/16] 0.0, 128
          %488 = vxpose.xlu0.b32.cont [8/16] 0.0, 128
          %489 = vxpose.xlu0.b32.cont [9/16] 0.0, 128
          %490 = vxpose.xlu0.b32.cont [10/16] 0.0, 128
          %491 = vxpose.xlu0.b32.cont [11/16] 0.0, 128
          %492 = vxpose.xlu0.b32.cont [12/16] 0.0, 128
          %493 = vxpose.xlu0.b32.cont [13/16] 0.0, 128
          %494 = vxpose.xlu0.b32.cont [14/16] 0.0, 128
          %495 = vxpose.xlu0.b32.cont [15/16] 0.0, 128
          %496 = vxpose.xlu0.b32.end [16/16] 0.0, 128
          %v497 = vpop.trf.xlu0
          %v498 = vpop.trf.xlu0
          %v499 = vpop.trf.xlu0
          %v500 = vpop.trf.xlu0
          %v501 = vpop.trf.xlu0
          %v502 = vpop.trf.xlu0
          %v503 = vpop.trf.xlu0
          %v504 = vpop.trf.xlu0
          %v505 = vpop.trf.xlu0
          %v506 = vpop.trf.xlu0
          %v507 = vpop.trf.xlu0
          %v508 = vpop.trf.xlu0
          %v509 = vpop.trf.xlu0
          %v510 = vpop.trf.xlu0
          %v511 = vpop.trf.xlu0
          %v512 = vpop.trf.xlu0
          %vm513 = vcmask 64512
          %514 = vst.msk [vmem:[#allocation3] sm:$0xff] %vm513, %v461
          %515 = vst.msk [vmem:[#allocation3 + $0x8] sm:$0xff] %vm513, %v462
          %vm516 = vcmask 57344
          %517 = vst.msk [vmem:[#allocation3 + $0x10] sm:$0x1] %vm516, 1.0
          %518 = vst.msk [vmem:[#allocation3 + $0x11] sm:$0x1] %vm516, %v497
          %s519 = scalar_lea.vmem [#allocation3], 24
          %520 = vst.msk [vmem:[%s519] sm:$0xff] %vm513, %v463
          %521 = vst.msk [vmem:[%s519 + $0x8] sm:$0xff] %vm513, %v464
          %522 = vst.msk [vmem:[%s519 + $0x10] sm:$0x1] %vm516, 1.0
          %vm523 = vcmask 58369
          %524 = vst.msk [vmem:[%s519 + $0x10] sm:$0x2] %vm523, %v497
          %s525 = scalar_lea.vmem [#allocation3], 48
          %526 = vst.msk [vmem:[%s525] sm:$0xff] %vm513, %v465
          %527 = vst.msk [vmem:[%s525 + $0x8] sm:$0xff] %vm513, %v466
          %528 = vst.msk [vmem:[%s525 + $0x10] sm:$0x1] %vm516, 1.0
          %vm529 = vcmask 59394
          %530 = vst.msk [vmem:[%s525 + $0xf] sm:$0x4] %vm529, %v497
          %s531 = scalar_lea.vmem [#allocation3], 72
          %532 = vst.msk [vmem:[%s531] sm:$0xff] %vm513, %v467
          %533 = vst.msk [vmem:[%s531 + $0x8] sm:$0xff] %vm513, %v468
          %534 = vst.msk [vmem:[%s531 + $0x10] sm:$0x1] %vm516, 1.0
          %vm535 = vcmask 60419
          %536 = vst.msk [vmem:[%s531 + $0xe] sm:$0x8] %vm535, %v497
          %s537 = scalar_lea.vmem [#allocation3], 96
          %538 = vst.msk [vmem:[%s537] sm:$0xff] %vm513, %v469
          %539 = vst.msk [vmem:[%s537 + $0x8] sm:$0xff] %vm513, %v470
          %540 = vst.msk [vmem:[%s537 + $0x10] sm:$0x1] %vm516, 1.0
          %vm541 = vcmask 61444
          %542 = vst.msk [vmem:[%s537 + $0xd] sm:$0x10] %vm541, %v497
          %s543 = scalar_lea.vmem [#allocation3], 120
          %544 = vst.msk [vmem:[%s543] sm:$0xff] %vm513, %v471
          %545 = vst.msk [vmem:[%s543 + $0x8] sm:$0xff] %vm513, %v472
          %546 = vst.msk [vmem:[%s543 + $0x10] sm:$0x1] %vm516, 1.0
          %vm547 = vcmask 62469
          %548 = vst.msk [vmem:[%s543 + $0xc] sm:$0x20] %vm547, %v497
        $region44: #{tpu_custom_call.1} parent=31 // pred_fallthru
          _
        %s549 = smul.u32 %s26, 8
        %s550 = scalar_lea.vmem [#allocation2], %s549
        %v551 = vld [vmem:[%s550] sm:$0xff]
        %v552 = vld [vmem:[#allocation4] sm:$0x1]
        %v553 = vld [vmem:[#allocation4 + $0x1] sm:$0x1]
        %v554 = vlaneseq
        %v555 = vshrl.u32 %v554, 7
        %v556 = vsub.s32 0, %v555
        %v557 = vrot.slane %v552, %v556
        %559 = vrot.lane.b32.xlu0 %v557, 96
        %v560 = vpop.permute.xlu0 %559
        %v562 = vmul.f32 %v551, %v560
        %v563 = vlaneseq
        %v564 = vshrl.u32 %v563, 7
        %v565 = vsub.s32 0, %v564
        %v566 = vrot.slane %v553, %v565
        %568 = vrot.lane.b32.xlu0 %v566, 96
        %v569 = vpop.permute.xlu0 %568
        %v571 = vmul.f32 %v551, %v569
        %v572 = vmax.f32 %v562, %v571
        %574 = vrot.lane.b32.xlu0 %v551, 32
        %v575 = vpop.permute.xlu0 %574
        %vm577 = vcmask 7168
        %578 = vst.msk [vmem:[#allocation5] sm:$0xff] %vm577, %v575
        %580 = vrot.lane.b32.xlu0 %v572, 33
        %v581 = vpop.permute.xlu0 %580
        %vm583 = vcmask 15368
        %584 = vst.msk [vmem:[#allocation5] sm:$0xff] %vm583, %v581
        %585 = vrot.lane.b32.xlu0 %v551, 31
        %v586 = vpop.permute.xlu0 %585
        %s588 = scalar_lea.vmem [#allocation5], 8
        %589 = vst.msk [vmem:[%s588] sm:$0xff] %vm577, %v586
        %590 = vrot.lane.b32.xlu0 %v572, 32
        %v591 = vpop.permute.xlu0 %590
        %593 = vst.msk [vmem:[%s588] sm:$0xff] %vm583, %v591
        %594 = vrot.lane.b32.xlu0 %v551, 30
        %v595 = vpop.permute.xlu0 %594
        %s597 = scalar_lea.vmem [#allocation5], 16
        %598 = vst.msk [vmem:[%s597] sm:$0xff] %vm577, %v595
        %599 = vrot.lane.b32.xlu0 %v572, 31
        %v600 = vpop.permute.xlu0 %599
        %602 = vst.msk [vmem:[%s597] sm:$0xff] %vm583, %v600
        %603 = vrot.lane.b32.xlu0 %v551, 29
        %v604 = vpop.permute.xlu0 %603
        %s606 = scalar_lea.vmem [#allocation5], 24
        %607 = vst.msk [vmem:[%s606] sm:$0xff] %vm577, %v604
        %608 = vrot.lane.b32.xlu0 %v572, 30
        %v609 = vpop.permute.xlu0 %608
        %611 = vst.msk [vmem:[%s606] sm:$0xff] %vm583, %v609
        %612 = vrot.lane.b32.xlu0 %v551, 28
        %v613 = vpop.permute.xlu0 %612
        %s615 = scalar_lea.vmem [#allocation5], 32
        %616 = vst.msk [vmem:[%s615] sm:$0xff] %vm577, %v613
        %617 = vrot.lane.b32.xlu0 %v572, 29
        %v618 = vpop.permute.xlu0 %617
        %620 = vst.msk [vmem:[%s615] sm:$0xff] %vm583, %v618
        %621 = vrot.lane.b32.xlu0 %v551, 27
        %v622 = vpop.permute.xlu0 %621
        %s624 = scalar_lea.vmem [#allocation5], 40
        %625 = vst.msk [vmem:[%s624] sm:$0xff] %vm577, %v622
        %626 = vrot.lane.b32.xlu0 %v572, 28
        %v627 = vpop.permute.xlu0 %626
        %629 = vst.msk [vmem:[%s624] sm:$0xff] %vm583, %v627
        loop: start=0, step=1, limit=6
        $region45: #{tpu_custom_call.1} parent=31 // loop_pre_header
          _
        $region46: #{tpu_custom_call.1} parent=31 // loop_header
          %s631 = sphi 0, %s635
          %p632 = scmp.ge.s32.totalorder %s631, 6
        $region47: #{tpu_custom_call.1} parent=31 // loop_header_branch
          %634 = sbr.rel (%p632) target = $region51
        $region48: #{tpu_custom_call.1} parent=31 // loop_body
          %s636 = smul.u32 %s631, 24
          %s637 = scalar_lea.vmem [#allocation3], %s636
          %v638 = vld [vmem:[%s637] sm:$0xff]
          %v639 = vld [vmem:[%s637 + $0x8] sm:$0xff]
          %v640 = vld [vmem:[%s637 + $0x10] sm:$0x3]
          %s641 = smul.u32 %s631, 8
          %s642 = scalar_lea.vmem [#allocation5], %s641
          %v643 = vld [vmem:[%s642] sm:$0xff]
          %645 = vset.pattern.permute.xlu0 0
          %646 = vperm.xlu0 %645, %v643
          %v647 = vpop.permute.xlu0 %646
          %v649 = vlaneseq
          %v650 = vshrl.u32 %v649, 7
          %v651 = vsub.s32 1, %v650
          %v652 = vrot.slane %v640, %v651
          %v653 = vmul.f32 %v647, %v652
          %654 = vset.pattern.permute.xlu0 1
          %655 = vperm.xlu0 %654, %v643
          %v656 = vpop.permute.xlu0 %655
          %v658 = vsub.f32 %v653, %v656
          %v659 = vmul.f32 %v658, 1.442695
          %v660 = vpow.pop %v659
          %vm661 = vcmask 64512
          %v663 = vsel %vm661, %v660, 0
          %v666 = vsel %vm661, %v638, 0
          %v669 = vsel %vm661, %v639, 0
          %v672 = vsel %vm661, %v640, 0
          %674 = vmatprep.subr.mxu0 0.0
          %675 = vmatpush1.xpose.msra.mxu0 0.0
          %676 = vmatprep.subr.mxu0 0.0
          %677 = vmatpush1.xpose.msra.mxu0 0.0
          %678 = vmatprep.subr.mxu0 0.0
          %679 = vmatpush1.xpose.msra.mxu0 0.0
          %680 = vmatprep.subr.mxu0 0.0
          %681 = vmatpush1.xpose.msra.mxu0 0.0
          %682 = vmatprep.subr.mxu0 0.0
          %683 = vmatpush1.xpose.msra.mxu0 0.0
          %684 = vmatprep.subr.mxu0 0.0
          %685 = vmatpush1.xpose.msra.mxu0 0.0
          %686 = vmatprep.subr.mxu0 0.0
          %687 = vmatpush1.xpose.msra.mxu0 0.0
          %688 = vmatprep.subr.mxu0 0.0
          %689 = vmatpush1.xpose.msra.mxu0 0.0
          %690 = vmatprep.subr.mxu0 0.0
          %691 = vmatpush1.xpose.msra.mxu0 0.0
          %692 = vmatprep.subr.mxu0 0.0
          %693 = vmatpush1.xpose.msra.mxu0 0.0
          %694 = vmatprep.subr.mxu0 0.0
          %695 = vmatpush1.xpose.msra.mxu0 0.0
          %696 = vmatprep.subr.mxu0 0.0
          %697 = vmatpush1.xpose.msra.mxu0 0.0
          %698 = vmatprep.subr.mxu0 0.0
          %699 = vmatpush1.xpose.msra.mxu0 0.0
          %700 = vmatprep.subr.mxu0 0.0
          %701 = vmatpush1.xpose.msra.mxu0 %v672
          %702 = vmatprep.subr.mxu0 0.0
          %703 = vmatpush1.xpose.msra.mxu0 %v669
          %704 = vmatprep.subr.mxu0 0.0
          %705 = vmatpush1.xpose.msra.mxu0 %v666
          %706 = vmatprep.subr.mxu0 0.0
          %707 = vmatpush2.xpose.msra.mxu0 0.0
          %708 = vmatprep.subr.mxu0 0.0
          %709 = vmatpush2.xpose.msra.mxu0 0.0
          %710 = vmatprep.subr.mxu0 0.0
          %711 = vmatpush2.xpose.msra.mxu0 0.0
          %712 = vmatprep.subr.mxu0 0.0
          %713 = vmatpush2.xpose.msra.mxu0 0.0
          %714 = vmatprep.subr.mxu0 0.0
          %715 = vmatpush2.xpose.msra.mxu0 0.0
          %716 = vmatprep.subr.mxu0 0.0
          %717 = vmatpush2.xpose.msra.mxu0 0.0
          %718 = vmatprep.subr.mxu0 0.0
          %719 = vmatpush2.xpose.msra.mxu0 0.0
          %720 = vmatprep.subr.mxu0 0.0
          %721 = vmatpush2.xpose.msra.mxu0 0.0
          %722 = vmatprep.subr.mxu0 0.0
          %723 = vmatpush2.xpose.msra.mxu0 0.0
          %724 = vmatprep.subr.mxu0 0.0
          %725 = vmatpush2.xpose.msra.mxu0 0.0
          %726 = vmatprep.subr.mxu0 0.0
          %727 = vmatpush2.xpose.msra.mxu0 0.0
          %728 = vmatprep.subr.mxu0 0.0
          %729 = vmatpush2.xpose.msra.mxu0 0.0
          %730 = vmatprep.subr.mxu0 0.0
          %731 = vmatpush2.xpose.msra.mxu0 0.0
          %732 = vmatprep.subr.mxu0 0.0
          %733 = vmatpush2.xpose.msra.mxu0 0.0
          %734 = vmatprep.subr.mxu0 0.0
          %735 = vmatpush2.xpose.msra.mxu0 0.0
          %736 = vmatprep.subr.mxu0 0.0
          %737 = vmatpush2.xpose.msra.mxu0 0.0
          %738 = vmatprep.mubr.f32.mxu0 0.0
          %739 = vmatmul.mubr.f32.gmra.mxu0 %v663
          %v740 = vpop.f32.mrf.mxu0
          %v741 = vadd.f32 0.0, %v740
          %v742 = vpop.f32.mrf.mxu0
          %743 = vdwg.mxu0
          %v744 = vrcp.pop %v741
          %746 = vset.pattern.permute.xlu0 16
          %747 = vperm.xlu0 %746, %v744
          %v748 = vpop.permute.xlu0 %747
          %v750 = vmul.f32 %v741, %v748
          %s751 = scalar_lea.vmem [#allocation6], %s641
          %vm752 = vcmask 130048
          %753 = vst.msk [vmem:[%s751] sm:$0xff] %vm752, %v750
        $region49: #{tpu_custom_call.1} parent=31 // loop_footer
          %s635 = sadd.s32 1, %s631
        $region50: #{tpu_custom_call.1} parent=31 // loop_footer_branch
          %630 = sbr.rel target = $region46
        $region51: #{tpu_custom_call.1} parent=31 // loop_exit
          _
        %v754 = vld [vmem:[#allocation6] sm:$0xff]
        %s755 = scalar_lea.vmem [#allocation6], 8
        %v756 = vld [vmem:[%s755] sm:$0xff]
        %s757 = scalar_lea.vmem [#allocation6], 16
        %v758 = vld [vmem:[%s757] sm:$0xff]
        %s759 = scalar_lea.vmem [#allocation6], 24
        %v760 = vld [vmem:[%s759] sm:$0xff]
        %s761 = scalar_lea.vmem [#allocation6], 32
        %v762 = vld [vmem:[%s761] sm:$0xff]
        %s763 = scalar_lea.vmem [#allocation6], 40
        %v764 = vld [vmem:[%s763] sm:$0xff]
        %766 = vrot.lane.b32.xlu0 %v756, 16
        %v767 = vpop.permute.xlu0 %766
        %770 = vrot.lane.b32.xlu0 %v758, 32
        %v771 = vpop.permute.xlu0 %770
        %774 = vrot.lane.b32.xlu0 %v760, 48
        %v775 = vpop.permute.xlu0 %774
        %778 = vrot.lane.b32.xlu0 %v762, 64
        %v779 = vpop.permute.xlu0 %778
        %782 = vrot.lane.b32.xlu0 %v764, 80
        %v783 = vpop.permute.xlu0 %782
        %vm785 = vcmask 130048
        %v786 = vsel %vm785, %v754, %v767
        %vm787 = vcmask 261120
        %v788 = vsel %vm787, %v786, %v771
        %vm789 = vcmask 392192
        %v790 = vsel %vm789, %v788, %v775
        %vm791 = vcmask 523264
        %v792 = vsel %vm791, %v790, %v779
        %vm793 = vcmask 654336
        %v794 = vsel %vm793, %v792, %v783
        %vm795 = vcmask 785408
        %v796 = vsel %vm795, %v794, 0.0
        %797 = vst [vmem:[%s215] sm:$0xff] %v796
        %s798 = sand.u32 %s111, 1
        %s799 = scalar_lea.sflag [#allocation9], %s798
        %s800 = sand.u32 %s111, 1
        %s801 = smul.addr %s800, 8
        %s802 = scalar_lea.vmem [#allocation12], %s801
        // Predicated region
        $region52: #{tpu_custom_call.1} parent=31 // pred_check
          %p803 = pneg %p121
        $region53: #{tpu_custom_call.1} parent=31 // pred_check_branch
          %805 = sbr.rel (%p803) target = $region55
        $region54: #{tpu_custom_call.1} parent=31 // pred_region
          %s807 = ssub.s32 128, 128
          %808 = vsyncadd %s799, %s807
          %s809 = sadd.s32 %s26, %s25
          %s810 = smul.addr %s809, 128
          %s811 = scalar_lea.hbm %s3, %s810
          %s813 = sshll.u32 %s802, 4
          %s814 = int_to_ptr.vmem [resolvable:$true] %s813
          %816 = dma.vmem_to_hbm [thread:$0]  %s814, 128, %s811, %s799
        $region55: #{tpu_custom_call.1} parent=31 // pred_fallthru
          _
      $region32: #{tpu_custom_call.1} parent=5 // pred_fallthru
        _
      %p817 = scmp.le.s32.totalorder 2, %s16
      // Predicated region
      $region56: #{tpu_custom_call.1} parent=5 // pred_check
        %p818 = pneg %p817
      $region57: #{tpu_custom_call.1} parent=5 // pred_check_branch
        %820 = sbr.rel (%p818) target = $region59
      $region58: #{tpu_custom_call.1} parent=5 // pred_region
        %s821 = ssub.s32 %s16, 2
        // Predicated region
        $region60: #{tpu_custom_call.1} parent=58 // pred_check
          %p822 = pneg %p127
        $region61: #{tpu_custom_call.1} parent=58 // pred_check_branch
          %824 = sbr.rel (%p822) target = $region63
        $region62: #{tpu_custom_call.1} parent=58 // pred_region
          %s825 = sand.u32 %s112, 1
          %s826 = scalar_lea.sflag [#allocation9], %s825
          %s827 = sand.u32 %s112, 1
          %s828 = smul.addr %s827, 8
          %s829 = scalar_lea.vmem [#allocation12], %s828
          %830 = dma.done %s826, 128
        $region63: #{tpu_custom_call.1} parent=58 // pred_fallthru
          _
      $region59: #{tpu_custom_call.1} parent=5 // pred_fallthru
        _
    $region6: #{tpu_custom_call.1} parent=1 // loop_footer
      %s20 = sadd.s32 1, %s16
    $region7: #{tpu_custom_call.1} parent=1 // loop_footer_branch
      %15 = sbr.rel target = $region3
    $region8: #{tpu_custom_call.1} parent=1 // loop_exit
      _
    %831 = vsyncpa [#allocation8], 1
    %s832 = scalar_lea.sflag [#allocation8], 1
    %833 = vsyncpa %s832, 1
    %834 = vsyncpa [#allocation11], 1
    %835 = vsyncpa [#allocation9], 1
    %s836 = scalar_lea.sflag [#allocation9], 1
    %837 = vsyncpa %s836, 1

</llo_original>
